<compile_context>
chip_gen: v5e
topology: v5e:2x2
jax: 0.10.0
libtpu: 0.0.40
codegen_flags: <defaults>
</compile_context>

<pallas_src>
import functools
import math

import jax
import jax.numpy as jnp
from jax import lax
from jax.experimental import pallas as pl
from jax.experimental.pallas import tpu as pltpu


def _uni_attention_kernel(xq_ref, posq_ref, xk_ref, posk_ref,
                          wqk_ref, wv_ref, wo_ref, o_ref,
                          q_sc, m_sc, l_sc, acc_sc,
                          *, n_heads, head_size, q_tile, kv_tile):
    # xq_ref  : (1, tq, H) bf16   query rows of x (re-fetched only when qi changes)
    # posq_ref: (tq, H)   bf16    positional embedding, query rows
    # xk_ref  : (1, tk, H) bf16   kv rows of x for this kv step
    # posk_ref: (tk, H)   bf16    positional embedding, kv rows
    # wqk_ref : (H, 2H)   bf16    [w_q * 1/sqrt(l) | w_k], whole array in VMEM
    # wv_ref  : (H, H)    bf16    w_v, whole array in VMEM
    # wo_ref  : (H, H)    bf16    w_out, whole array in VMEM
    # o_ref   : (1, tq, H)
    # scratch : q_sc (tq,H) bf16; m_sc/l_sc (nh,tq,1) f32; acc_sc (tq,H) f32
    f32, bf16 = jnp.float32, jnp.bfloat16
    H = n_heads * head_size
    tq, tk = q_tile, kv_tile

    ki = pl.program_id(2)
    nk = pl.num_programs(2)
    q0 = pl.program_id(1) * tq
    k0 = ki * tk

    # ---- once per (batch, q-tile): project Q (scale pre-folded into w_q) and
    #      reset the online-softmax state.
    @pl.when(ki == 0)
    def _init():
        xq = xq_ref[0] + posq_ref[...]                                  # (tq, H) bf16
        q = jnp.dot(xq, wqk_ref[:, 0:H], preferred_element_type=f32)
        q_sc[...] = q.astype(bf16)                                      # single cast
        m_sc[...] = jnp.full((n_heads, tq, 1), -jnp.inf, f32)
        l_sc[...] = jnp.zeros((n_heads, tq, 1), f32)
        acc_sc[...] = jnp.zeros((tq, H), f32)

    # ---- per kv tile; skipped when the whole tile is in the causal future of
    #      this query tile (saves ~2x of QK^T / exp / PV work).
    @pl.when(k0 < q0 + tq)
    def _accumulate():
        xk = xk_ref[0]                                                  # (tk, H) bf16
        # Lane-dense K/V projections (N = H), one cast each.
        k = jnp.dot(xk + posk_ref[...], wqk_ref[:, H:2 * H],
                    preferred_element_type=f32).astype(bf16)            # (tk, H)
        v = jnp.dot(xk, wv_ref[...],
                    preferred_element_type=f32).astype(bf16)            # (tk, H)

        # Causal predicate computed once at (tq, tk), shared by all heads.
        q_idx = q0 + lax.broadcasted_iota(jnp.int32, (tq, tk), 0)
        k_idx = k0 + lax.broadcasted_iota(jnp.int32, (tq, tk), 1)
        future = q_idx < k_idx

        # Per-head attention core (static unroll; nh is small).  The per-head
        # context goes straight into its lane slot of the (tq, H) accumulator,
        # so no head re-merge is needed at the end.
        for h in range(n_heads):
            sl = slice(h * head_size, (h + 1) * head_size)
            s = lax.dot_general(q_sc[:, sl], k[:, sl],
                                (((1,), (1,)), ((), ())),               # q @ k^T
                                preferred_element_type=f32)             # (tq, tk)
            s = jnp.where(future, f32(-10000.0), s)                     # module's fill

            m_prev = m_sc[h]                                            # (tq, 1)
            m_new = jnp.maximum(m_prev, jnp.max(s, axis=-1, keepdims=True))
            alpha = jnp.exp(m_prev - m_new)
            p = jnp.exp(s - m_new)                                      # (tq, tk) f32
            l_sc[h] = alpha * l_sc[h] + jnp.sum(p, axis=-1, keepdims=True)
            pv = jnp.dot(p.astype(bf16), v[:, sl],
                         preferred_element_type=f32)                    # (tq, l)
            acc_sc[:, sl] = alpha * acc_sc[:, sl] + pv
            m_sc[h] = m_new

    # ---- once per (batch, q-tile): normalize (deferred softmax denominator,
    #      EUP reciprocal) and apply the fused K=H, N=H output projection.
    @pl.when(ki == nk - 1)
    def _finalize():
        for h in range(n_heads):
            sl = slice(h * head_size, (h + 1) * head_size)
            acc_sc[:, sl] = acc_sc[:, sl] * pl.reciprocal(l_sc[h], approx=True)
        out = jnp.dot(acc_sc[...].astype(bf16), wo_ref[...],
                      preferred_element_type=f32)                       # (tq, H)
        o_ref[0] = out.astype(o_ref.dtype)


def uni_attention(x, pos_emb, w_qkv, w_out, *, n_heads, q_tile=None, kv_tile=None):
    """x: (B, S, H) f32, pos_emb: (S, H), w_qkv: (H, 3H), w_out: (H, H)."""
    B, S, H = x.shape
    assert H % n_heads == 0
    head_size = H // n_heads
    f32, bf16 = jnp.float32, jnp.bfloat16

    # Production-ish default tiles (>= 256 query rows amortizes per-step
    # overhead); clamped to S for small sequences.
    def _default_tile(target):
        t = min(S, target)
        return t if S % t == 0 else S
    q_tile = q_tile if q_tile is not None else _default_tile(256)
    kv_tile = kv_tile if kv_tile is not None else _default_tile(512)
    assert S % q_tile == 0 and S % kv_tile == 0
    nq, nk = S // q_tile, S // kv_tile

    # Host-side weight prep (runs once in XLA, outside the kernel):
    #   * split the fused (H, 3H) qkv weight, drop the unused thirds,
    #   * fold 1/sqrt(head_size) into w_q,
    #   * fuse w_q|w_k into a single lane-dense (H, 2H) slab (both consume x+pos),
    #   * cast everything to bf16 for the MXU.
    scale = 1.0 / math.sqrt(head_size)
    w_qk = jnp.concatenate([w_qkv[:, 0:H] * scale, w_qkv[:, H:2 * H]],
                           axis=1).astype(bf16)                         # (H, 2H)
    w_v = w_qkv[:, 2 * H:3 * H].astype(bf16)                            # (H, H)
    w_o = w_out.astype(bf16)                                            # (H, H)

    # bf16 activation DMA (half the HBM bytes on the x / pos streams).
    x_bf = x.astype(bf16)
    pos_bf = pos_emb.astype(bf16)

    kernel = functools.partial(_uni_attention_kernel, n_heads=n_heads,
                               head_size=head_size, q_tile=q_tile, kv_tile=kv_tile)

    # Whole-array, single-copy VMEM residency for the constant weights — no
    # double-buffered duplicates (v7x 64 MiB VMEM headroom).
    def weight_spec():
        return pl.BlockSpec(memory_space=pltpu.MemorySpace.VMEM)

    return pl.pallas_call(
        kernel,
        out_shape=jax.ShapeDtypeStruct((B, S, H), x.dtype),
        grid_spec=pltpu.PrefetchScalarGridSpec(
            num_scalar_prefetch=0,
            grid=(B, nq, nk),                                           # kv innermost
            in_specs=[
                pl.BlockSpec((1, q_tile, H), lambda b, qi, ki: (b, qi, 0)),   # x, q rows
                pl.BlockSpec((q_tile, H),    lambda b, qi, ki: (qi, 0)),      # pos, q rows
                pl.BlockSpec((1, kv_tile, H), lambda b, qi, ki: (b, ki, 0)),  # x, kv rows
                pl.BlockSpec((kv_tile, H),    lambda b, qi, ki: (ki, 0)),     # pos, kv rows
                weight_spec(),   # w_qk
                weight_spec(),   # w_v
                weight_spec(),   # w_out
            ],
            out_specs=pl.BlockSpec((1, q_tile, H), lambda b, qi, ki: (b, qi, 0)),
            scratch_shapes=[
                pltpu.VMEM((q_tile, H), bf16),              # scaled q, per (b, qi)
                pltpu.VMEM((n_heads, q_tile, 1), f32),      # running max
                pltpu.VMEM((n_heads, q_tile, 1), f32),      # running denom
                pltpu.VMEM((q_tile, H), f32),               # un-normalized context
            ],
        ),
        compiler_params=pltpu.CompilerParams(
            dimension_semantics=("parallel", "parallel", "arbitrary"),
            vmem_limit_bytes=32 * 1024 * 1024,              # headroom even on v7x (64 MiB)
        ),
    )(x_bf, pos_bf, x_bf, pos_bf, w_qk, w_v, w_o)


def uni_attention_ref(x, pos_emb, w_qkv, w_out, *, n_heads):
    """Pure-JAX f32 reference mirroring the PyTorch module."""
    B, S, H = x.shape
    l = H // n_heads
    qk_proj = (x + pos_emb[None]) @ w_qkv
    v_proj = x @ w_qkv
    q, k, _ = jnp.split(qk_proj, 3, axis=-1)
    _, _, v = jnp.split(v_proj, 3, axis=-1)
    q = q.reshape(B, S, n_heads, l).transpose(0, 2, 1, 3)
    k = k.reshape(B, S, n_heads, l).transpose(0, 2, 1, 3)
    v = v.reshape(B, S, n_heads, l).transpose(0, 2, 1, 3)
    scores = jnp.einsum('bhql,bhkl->bhqk', q, k) / math.sqrt(l)
    q_ind = jnp.arange(S)[:, None]
    k_ind = jnp.arange(S)[None, :]
    scores = jnp.where(q_ind < k_ind, jnp.float32(-10000.0), scores)
    probs = jax.nn.softmax(scores, axis=-1)
    combined = jnp.einsum('bhqk,bhkl->bhql', probs, v)
    combined = combined.transpose(0, 2, 1, 3).reshape(B, S, H)
    return combined @ w_out


if __name__ == "__main__":
    # Small shapes, but sized so the KV grid axis / online softmax / causal
    # tile-skip are actually exercised (grid = (2, 2, 2)).
    batch, seq, hidden, n_heads = 2, 32, 32, 4
    max_pos = 32

    key = jax.random.PRNGKey(0)
    k1, k2, k3, k4 = jax.random.split(key, 4)

    # Deterministic synthetic parameters. PyTorch Linear weight is (out, in);
    # we store the transpose (in, out).
    w_qkv = jax.random.normal(k1, (hidden, 3 * hidden), jnp.float32) / math.sqrt(hidden)
    w_out = jax.random.normal(k2, (hidden, hidden), jnp.float32) / math.sqrt(hidden)
    pos_table = jax.random.normal(k3, (max_pos, hidden), jnp.float32) * 0.02

    x = jax.random.normal(k4, (batch, seq, hidden), jnp.float32)
    pos_emb = pos_table[:seq]   # pos_embedding(arange(seq)), shared across batch

    out = uni_attention(x, pos_emb, w_qkv, w_out, n_heads=n_heads,
                        q_tile=16, kv_tile=16)
    out = jax.block_until_ready(out)

    ref = uni_attention_ref(x, pos_emb, w_qkv, w_out, n_heads=n_heads)
    assert out.shape == (batch, seq, hidden)
    # bf16 MXU operands / bf16 activation DMA (f32 accumulation) vs f32
    # reference -> loosened tolerance.
    assert jnp.allclose(out, ref, atol=6e-2, rtol=6e-2), "mismatch vs reference"

    print("KERNEL_OK")
</pallas_src>

<mosaic_0001>
module attributes {stable_mosaic.version = 11 : i64} {
  func.func @_uni_attention_kernel(%arg0: i32, %arg1: i32, %arg2: i32, %arg3: memref<1x16x32xbf16, #tpu.memory_space<vmem>>, %arg4: memref<16x32xbf16, #tpu.memory_space<vmem>>, %arg5: memref<1x16x32xbf16, #tpu.memory_space<vmem>>, %arg6: memref<16x32xbf16, #tpu.memory_space<vmem>>, %arg7: memref<32x64xbf16, #tpu.memory_space<vmem>>, %arg8: memref<32x32xbf16, #tpu.memory_space<vmem>>, %arg9: memref<32x32xbf16, #tpu.memory_space<vmem>>, %arg10: memref<1x16x32xf32, #tpu.memory_space<vmem>>, %arg11: memref<16x32xbf16, #tpu.memory_space<vmem>>, %arg12: memref<4x16x1xf32, #tpu.memory_space<vmem>>, %arg13: memref<4x16x1xf32, #tpu.memory_space<vmem>>, %arg14: memref<16x32xf32, #tpu.memory_space<vmem>>) attributes {dimension_semantics = [#tpu.dimension_semantics<parallel>, #tpu.dimension_semantics<parallel>, #tpu.dimension_semantics<arbitrary>], iteration_bounds = array<i64: 2, 2, 2>, scalar_prefetch = 0 : i64, scratch_operands = 4 : i64, tpu.core_type = #tpu.core_type<tc>, window_params = [{transform_indices = @transform_0, window_bounds = array<i64: 1, 16, 32>}, {transform_indices = @transform_1, window_bounds = array<i64: 16, 32>}, {transform_indices = @transform_2, window_bounds = array<i64: 1, 16, 32>}, {transform_indices = @transform_3, window_bounds = array<i64: 16, 32>}, {pipeline_mode = #tpu.pipeline_mode<synchronous>, transform_indices = @transform_4, window_bounds = array<i64: 32, 64>}, {pipeline_mode = #tpu.pipeline_mode<synchronous>, transform_indices = @transform_5, window_bounds = array<i64: 32, 32>}, {pipeline_mode = #tpu.pipeline_mode<synchronous>, transform_indices = @transform_6, window_bounds = array<i64: 32, 32>}, {transform_indices = @transform_7, window_bounds = array<i64: 1, 16, 32>}]} {
    %c16_i32 = arith.constant 16 : i32
    %0 = arith.muli %arg1, %c16_i32 : i32
    %c16_i32_0 = arith.constant 16 : i32
    %1 = arith.muli %arg2, %c16_i32_0 : i32
    %c0_i32 = arith.constant 0 : i32
    %2 = arith.cmpi eq, %arg2, %c0_i32 : i32
    %3 = arith.extui %2 : i1 to i32
    %c0_i32_1 = arith.constant 0 : i32
    %4 = arith.cmpi ne, %3, %c0_i32_1 : i32
    scf.if %4 {
      %c0 = arith.constant 0 : index
      %c0_5 = arith.constant 0 : index
      %c0_6 = arith.constant 0 : index
      %12 = vector.load %arg3[%c0, %c0_5, %c0_6] : memref<1x16x32xbf16, #tpu.memory_space<vmem>>, vector<1x16x32xbf16>
      %13 = vector.shape_cast %12 : vector<1x16x32xbf16> to vector<16x32xbf16>
      %c0_7 = arith.constant 0 : index
      %c0_8 = arith.constant 0 : index
      %14 = vector.load %arg4[%c0_7, %c0_8] : memref<16x32xbf16, #tpu.memory_space<vmem>>, vector<16x32xbf16>
      %15 = arith.addf %13, %14 : vector<16x32xbf16>
      %c0_9 = arith.constant 0 : index
      %c0_10 = arith.constant 0 : index
      %16 = vector.load %arg7[%c0_9, %c0_10] : memref<32x64xbf16, #tpu.memory_space<vmem>>, vector<32x32xbf16>
      %cst = arith.constant dense<0.000000e+00> : vector<16x32xf32>
      %17 = tpu.matmul %15, %16, %cst {dimension_numbers = #tpu.dot_dimension_numbers<[1], [0], [0], [1], [0, 0, 1, 1], [], []>} : vector<16x32xbf16>, vector<32x32xbf16>, vector<16x32xf32> -> vector<16x32xf32>
      %18 = arith.truncf %17 : vector<16x32xf32> to vector<16x32xbf16>
      %c0_11 = arith.constant 0 : index
      %c0_12 = arith.constant 0 : index
      %19 = vector.load %arg11[%c0_11, %c0_12] : memref<16x32xbf16, #tpu.memory_space<vmem>>, vector<16x32xbf16>
      tpu.vector_store %arg11[%c0_11, %c0_12], %18 {strides = array<i32>} : memref<16x32xbf16, #tpu.memory_space<vmem>>, vector<16x32xbf16>,
      %cst_13 = arith.constant 0xFF800000 : f32
      %20 = vector.broadcast %cst_13 : f32 to vector<4x16x1xf32>
      %c0_14 = arith.constant 0 : index
      %c0_15 = arith.constant 0 : index
      %c0_16 = arith.constant 0 : index
      %21 = vector.load %arg12[%c0_14, %c0_15, %c0_16] : memref<4x16x1xf32, #tpu.memory_space<vmem>>, vector<4x16x1xf32>
      tpu.vector_store %arg12[%c0_14, %c0_15, %c0_16], %20 {strides = array<i32>} : memref<4x16x1xf32, #tpu.memory_space<vmem>>, vector<4x16x1xf32>,
      %cst_17 = arith.constant 0.000000e+00 : f32
      %22 = vector.broadcast %cst_17 : f32 to vector<4x16x1xf32>
      %c0_18 = arith.constant 0 : index
      %c0_19 = arith.constant 0 : index
      %c0_20 = arith.constant 0 : index
      %23 = vector.load %arg13[%c0_18, %c0_19, %c0_20] : memref<4x16x1xf32, #tpu.memory_space<vmem>>, vector<4x16x1xf32>
      tpu.vector_store %arg13[%c0_18, %c0_19, %c0_20], %22 {strides = array<i32>} : memref<4x16x1xf32, #tpu.memory_space<vmem>>, vector<4x16x1xf32>,
      %cst_21 = arith.constant 0.000000e+00 : f32
      %24 = vector.broadcast %cst_21 : f32 to vector<16x32xf32>
      %c0_22 = arith.constant 0 : index
      %c0_23 = arith.constant 0 : index
      %25 = vector.load %arg14[%c0_22, %c0_23] : memref<16x32xf32, #tpu.memory_space<vmem>>, vector<16x32xf32>
      tpu.vector_store %arg14[%c0_22, %c0_23], %24 {strides = array<i32>} : memref<16x32xf32, #tpu.memory_space<vmem>>, vector<16x32xf32>,
    } else {
    }
    %c16_i32_2 = arith.constant 16 : i32
    %5 = arith.addi %0, %c16_i32_2 : i32
    %6 = arith.cmpi slt, %1, %5 : i32
    %7 = arith.extui %6 : i1 to i32
    %c0_i32_3 = arith.constant 0 : i32
    %8 = arith.cmpi ne, %7, %c0_i32_3 : i32
    scf.if %8 {
      %c0 = arith.constant 0 : index
      %c0_5 = arith.constant 0 : index
      %c0_6 = arith.constant 0 : index
      %12 = vector.load %arg5[%c0, %c0_5, %c0_6] : memref<1x16x32xbf16, #tpu.memory_space<vmem>>, vector<1x16x32xbf16>
      %13 = vector.shape_cast %12 : vector<1x16x32xbf16> to vector<16x32xbf16>
      %c0_7 = arith.constant 0 : index
      %c0_8 = arith.constant 0 : index
      %14 = vector.load %arg6[%c0_7, %c0_8] : memref<16x32xbf16, #tpu.memory_space<vmem>>, vector<16x32xbf16>
      %15 = arith.addf %13, %14 : vector<16x32xbf16>
      %c0_9 = arith.constant 0 : index
      %c32 = arith.constant 32 : index
      %16 = vector.load %arg7[%c0_9, %c32] : memref<32x64xbf16, #tpu.memory_space<vmem>>, vector<32x32xbf16>
      %cst = arith.constant dense<0.000000e+00> : vector<16x32xf32>
      %17 = tpu.matmul %15, %16, %cst {dimension_numbers = #tpu.dot_dimension_numbers<[1], [0], [0], [1], [0, 0, 1, 1], [], []>} : vector<16x32xbf16>, vector<32x32xbf16>, vector<16x32xf32> -> vector<16x32xf32>
      %18 = arith.truncf %17 : vector<16x32xf32> to vector<16x32xbf16>
      %c0_10 = arith.constant 0 : index
      %c0_11 = arith.constant 0 : index
      %19 = vector.load %arg8[%c0_10, %c0_11] : memref<32x32xbf16, #tpu.memory_space<vmem>>, vector<32x32xbf16>
      %cst_12 = arith.constant dense<0.000000e+00> : vector<16x32xf32>
      %20 = tpu.matmul %13, %19, %cst_12 {dimension_numbers = #tpu.dot_dimension_numbers<[1], [0], [0], [1], [0, 0, 1, 1], [], []>} : vector<16x32xbf16>, vector<32x32xbf16>, vector<16x32xf32> -> vector<16x32xf32>
      %21 = arith.truncf %20 : vector<16x32xf32> to vector<16x32xbf16>
      %22 = tpu.iota {dimensions = array<i32: 0>} : vector<16x16xi32>
      %23 = vector.broadcast %0 : i32 to vector<16x16xi32>
      %24 = arith.addi %23, %22 : vector<16x16xi32>
      %25 = tpu.iota {dimensions = array<i32: 1>} : vector<16x16xi32>
      %26 = vector.broadcast %1 : i32 to vector<16x16xi32>
      %27 = arith.addi %26, %25 : vector<16x16xi32>
      %28 = arith.cmpi slt, %24, %27 : vector<16x16xi32>
      %c0_13 = arith.constant 0 : index
      %c0_14 = arith.constant 0 : index
      %29 = vector.load %arg11[%c0_13, %c0_14] : memref<16x32xbf16, #tpu.memory_space<vmem>>, vector<16x8xbf16>
      %30 = vector.extract_strided_slice %18 {offsets = [0, 0], sizes = [16, 8], strides = [1, 1]} : vector<16x32xbf16> to vector<16x8xbf16>
      %cst_15 = arith.constant dense<0.000000e+00> : vector<16x16xf32>
      %31 = tpu.matmul %29, %30, %cst_15 {dimension_numbers = #tpu.dot_dimension_numbers<[1], [1], [0], [0], [0, 0, 1, 0], [], []>} : vector<16x8xbf16>, vector<16x8xbf16>, vector<16x16xf32> -> vector<16x16xf32>
      %cst_16 = arith.constant -1.000000e+04 : f32
      %32 = vector.broadcast %cst_16 : f32 to vector<16x16xf32>
      %33 = arith.select %28, %32, %31 : vector<16x16xi1>, vector<16x16xf32>
      %c0_17 = arith.constant 0 : index
      %c0_18 = arith.constant 0 : index
      %c0_19 = arith.constant 0 : index
      %34 = vector.load %arg12[%c0_17, %c0_18, %c0_19] : memref<4x16x1xf32, #tpu.memory_space<vmem>>, vector<1x16x1xf32>
      %35 = vector.shape_cast %34 : vector<1x16x1xf32> to vector<16x1xf32>
      %cst_20 = arith.constant dense<0xFF800000> : vector<16xf32>
      %36 = vector.multi_reduction <maximumf>, %33, %cst_20 [1] : vector<16x16xf32> to vector<16xf32>
      %37 = vector.shape_cast %36 : vector<16xf32> to vector<16x1xf32>
      %38 = arith.maximumf %35, %37 : vector<16x1xf32>
      %39 = arith.subf %35, %38 : vector<16x1xf32>
      %40 = math.exp %39 : vector<16x1xf32>
      %41 = vector.broadcast %38 : vector<16x1xf32> to vector<16x16xf32>
      %42 = arith.subf %33, %41 : vector<16x16xf32>
      %43 = math.exp %42 : vector<16x16xf32>
      %c0_21 = arith.constant 0 : index
      %c0_22 = arith.constant 0 : index
      %c0_23 = arith.constant 0 : index
      %44 = vector.load %arg13[%c0_21, %c0_22, %c0_23] : memref<4x16x1xf32, #tpu.memory_space<vmem>>, vector<1x16x1xf32>
      %45 = vector.shape_cast %44 : vector<1x16x1xf32> to vector<16x1xf32>
      %46 = arith.mulf %40, %45 : vector<16x1xf32>
      %cst_24 = arith.constant dense<0.000000e+00> : vector<16xf32>
      %47 = vector.multi_reduction <add>, %43, %cst_24 [1] : vector<16x16xf32> to vector<16xf32>
      %48 = vector.shape_cast %47 : vector<16xf32> to vector<16x1xf32>
      %49 = arith.addf %46, %48 : vector<16x1xf32>
      %c0_25 = arith.constant 0 : index
      %c0_26 = arith.constant 0 : index
      %c0_27 = arith.constant 0 : index
      %50 = vector.load %arg13[%c0_25, %c0_26, %c0_27] : memref<4x16x1xf32, #tpu.memory_space<vmem>>, vector<1x16x1xf32>
      %51 = vector.shape_cast %50 : vector<1x16x1xf32> to vector<16x1xf32>
      %52 = vector.shape_cast %49 : vector<16x1xf32> to vector<1x16x1xf32>
      tpu.vector_store %arg13[%c0_25, %c0_26, %c0_27], %52 {strides = array<i32>} : memref<4x16x1xf32, #tpu.memory_space<vmem>>, vector<1x16x1xf32>,
      %53 = arith.truncf %43 : vector<16x16xf32> to vector<16x16xbf16>
      %54 = vector.extract_strided_slice %21 {offsets = [0, 0], sizes = [16, 8], strides = [1, 1]} : vector<16x32xbf16> to vector<16x8xbf16>
      %cst_28 = arith.constant dense<0.000000e+00> : vector<16x8xf32>
      %55 = tpu.matmul %53, %54, %cst_28 {dimension_numbers = #tpu.dot_dimension_numbers<[1], [0], [0], [1], [0, 0, 1, 1], [], []>} : vector<16x16xbf16>, vector<16x8xbf16>, vector<16x8xf32> -> vector<16x8xf32>
      %c0_29 = arith.constant 0 : index
      %c0_30 = arith.constant 0 : index
      %56 = vector.load %arg14[%c0_29, %c0_30] : memref<16x32xf32, #tpu.memory_space<vmem>>, vector<16x8xf32>
      %57 = vector.broadcast %40 : vector<16x1xf32> to vector<16x8xf32>
      %58 = arith.mulf %57, %56 : vector<16x8xf32>
      %59 = arith.addf %58, %55 : vector<16x8xf32>
      %c0_31 = arith.constant 0 : index
      %c0_32 = arith.constant 0 : index
      %60 = vector.load %arg14[%c0_31, %c0_32] : memref<16x32xf32, #tpu.memory_space<vmem>>, vector<16x8xf32>
      tpu.vector_store %arg14[%c0_31, %c0_32], %59 {strides = array<i32>} : memref<16x32xf32, #tpu.memory_space<vmem>>, vector<16x8xf32>,
      %c0_33 = arith.constant 0 : index
      %c0_34 = arith.constant 0 : index
      %c0_35 = arith.constant 0 : index
      %61 = vector.load %arg12[%c0_33, %c0_34, %c0_35] : memref<4x16x1xf32, #tpu.memory_space<vmem>>, vector<1x16x1xf32>
      %62 = vector.shape_cast %61 : vector<1x16x1xf32> to vector<16x1xf32>
      %63 = vector.shape_cast %38 : vector<16x1xf32> to vector<1x16x1xf32>
      tpu.vector_store %arg12[%c0_33, %c0_34, %c0_35], %63 {strides = array<i32>} : memref<4x16x1xf32, #tpu.memory_space<vmem>>, vector<1x16x1xf32>,
      %c0_36 = arith.constant 0 : index
      %c8 = arith.constant 8 : index
      %64 = vector.load %arg11[%c0_36, %c8] : memref<16x32xbf16, #tpu.memory_space<vmem>>, vector<16x8xbf16>
      %65 = vector.extract_strided_slice %18 {offsets = [0, 8], sizes = [16, 8], strides = [1, 1]} : vector<16x32xbf16> to vector<16x8xbf16>
      %cst_37 = arith.constant dense<0.000000e+00> : vector<16x16xf32>
      %66 = tpu.matmul %64, %65, %cst_37 {dimension_numbers = #tpu.dot_dimension_numbers<[1], [1], [0], [0], [0, 0, 1, 0], [], []>} : vector<16x8xbf16>, vector<16x8xbf16>, vector<16x16xf32> -> vector<16x16xf32>
      %cst_38 = arith.constant -1.000000e+04 : f32
      %67 = vector.broadcast %cst_38 : f32 to vector<16x16xf32>
      %68 = arith.select %28, %67, %66 : vector<16x16xi1>, vector<16x16xf32>
      %c1 = arith.constant 1 : index
      %c0_39 = arith.constant 0 : index
      %c0_40 = arith.constant 0 : index
      %69 = vector.load %arg12[%c1, %c0_39, %c0_40] : memref<4x16x1xf32, #tpu.memory_space<vmem>>, vector<1x16x1xf32>
      %70 = vector.shape_cast %69 : vector<1x16x1xf32> to vector<16x1xf32>
      %cst_41 = arith.constant dense<0xFF800000> : vector<16xf32>
      %71 = vector.multi_reduction <maximumf>, %68, %cst_41 [1] : vector<16x16xf32> to vector<16xf32>
      %72 = vector.shape_cast %71 : vector<16xf32> to vector<16x1xf32>
      %73 = arith.maximumf %70, %72 : vector<16x1xf32>
      %74 = arith.subf %70, %73 : vector<16x1xf32>
      %75 = math.exp %74 : vector<16x1xf32>
      %76 = vector.broadcast %73 : vector<16x1xf32> to vector<16x16xf32>
      %77 = arith.subf %68, %76 : vector<16x16xf32>
      %78 = math.exp %77 : vector<16x16xf32>
      %c1_42 = arith.constant 1 : index
      %c0_43 = arith.constant 0 : index
      %c0_44 = arith.constant 0 : index
      %79 = vector.load %arg13[%c1_42, %c0_43, %c0_44] : memref<4x16x1xf32, #tpu.memory_space<vmem>>, vector<1x16x1xf32>
      %80 = vector.shape_cast %79 : vector<1x16x1xf32> to vector<16x1xf32>
      %81 = arith.mulf %75, %80 : vector<16x1xf32>
      %cst_45 = arith.constant dense<0.000000e+00> : vector<16xf32>
      %82 = vector.multi_reduction <add>, %78, %cst_45 [1] : vector<16x16xf32> to vector<16xf32>
      %83 = vector.shape_cast %82 : vector<16xf32> to vector<16x1xf32>
      %84 = arith.addf %81, %83 : vector<16x1xf32>
      %c1_46 = arith.constant 1 : index
      %c0_47 = arith.constant 0 : index
      %c0_48 = arith.constant 0 : index
      %85 = vector.load %arg13[%c1_46, %c0_47, %c0_48] : memref<4x16x1xf32, #tpu.memory_space<vmem>>, vector<1x16x1xf32>
      %86 = vector.shape_cast %85 : vector<1x16x1xf32> to vector<16x1xf32>
      %87 = vector.shape_cast %84 : vector<16x1xf32> to vector<1x16x1xf32>
      tpu.vector_store %arg13[%c1_46, %c0_47, %c0_48], %87 {strides = array<i32>} : memref<4x16x1xf32, #tpu.memory_space<vmem>>, vector<1x16x1xf32>,
      %88 = arith.truncf %78 : vector<16x16xf32> to vector<16x16xbf16>
      %89 = vector.extract_strided_slice %21 {offsets = [0, 8], sizes = [16, 8], strides = [1, 1]} : vector<16x32xbf16> to vector<16x8xbf16>
      %cst_49 = arith.constant dense<0.000000e+00> : vector<16x8xf32>
      %90 = tpu.matmul %88, %89, %cst_49 {dimension_numbers = #tpu.dot_dimension_numbers<[1], [0], [0], [1], [0, 0, 1, 1], [], []>} : vector<16x16xbf16>, vector<16x8xbf16>, vector<16x8xf32> -> vector<16x8xf32>
      %c0_50 = arith.constant 0 : index
      %c8_51 = arith.constant 8 : index
      %91 = vector.load %arg14[%c0_50, %c8_51] : memref<16x32xf32, #tpu.memory_space<vmem>>, vector<16x8xf32>
      %92 = vector.broadcast %75 : vector<16x1xf32> to vector<16x8xf32>
      %93 = arith.mulf %92, %91 : vector<16x8xf32>
      %94 = arith.addf %93, %90 : vector<16x8xf32>
      %c0_52 = arith.constant 0 : index
      %c8_53 = arith.constant 8 : index
      %95 = vector.load %arg14[%c0_52, %c8_53] : memref<16x32xf32, #tpu.memory_space<vmem>>, vector<16x8xf32>
      tpu.vector_store %arg14[%c0_52, %c8_53], %94 {strides = array<i32>} : memref<16x32xf32, #tpu.memory_space<vmem>>, vector<16x8xf32>,
      %c1_54 = arith.constant 1 : index
      %c0_55 = arith.constant 0 : index
      %c0_56 = arith.constant 0 : index
      %96 = vector.load %arg12[%c1_54, %c0_55, %c0_56] : memref<4x16x1xf32, #tpu.memory_space<vmem>>, vector<1x16x1xf32>
      %97 = vector.shape_cast %96 : vector<1x16x1xf32> to vector<16x1xf32>
      %98 = vector.shape_cast %73 : vector<16x1xf32> to vector<1x16x1xf32>
      tpu.vector_store %arg12[%c1_54, %c0_55, %c0_56], %98 {strides = array<i32>} : memref<4x16x1xf32, #tpu.memory_space<vmem>>, vector<1x16x1xf32>,
      %c0_57 = arith.constant 0 : index
      %c16 = arith.constant 16 : index
      %99 = vector.load %arg11[%c0_57, %c16] : memref<16x32xbf16, #tpu.memory_space<vmem>>, vector<16x8xbf16>
      %100 = vector.extract_strided_slice %18 {offsets = [0, 16], sizes = [16, 8], strides = [1, 1]} : vector<16x32xbf16> to vector<16x8xbf16>
      %cst_58 = arith.constant dense<0.000000e+00> : vector<16x16xf32>
      %101 = tpu.matmul %99, %100, %cst_58 {dimension_numbers = #tpu.dot_dimension_numbers<[1], [1], [0], [0], [0, 0, 1, 0], [], []>} : vector<16x8xbf16>, vector<16x8xbf16>, vector<16x16xf32> -> vector<16x16xf32>
      %cst_59 = arith.constant -1.000000e+04 : f32
      %102 = vector.broadcast %cst_59 : f32 to vector<16x16xf32>
      %103 = arith.select %28, %102, %101 : vector<16x16xi1>, vector<16x16xf32>
      %c2 = arith.constant 2 : index
      %c0_60 = arith.constant 0 : index
      %c0_61 = arith.constant 0 : index
      %104 = vector.load %arg12[%c2, %c0_60, %c0_61] : memref<4x16x1xf32, #tpu.memory_space<vmem>>, vector<1x16x1xf32>
      %105 = vector.shape_cast %104 : vector<1x16x1xf32> to vector<16x1xf32>
      %cst_62 = arith.constant dense<0xFF800000> : vector<16xf32>
      %106 = vector.multi_reduction <maximumf>, %103, %cst_62 [1] : vector<16x16xf32> to vector<16xf32>
      %107 = vector.shape_cast %106 : vector<16xf32> to vector<16x1xf32>
      %108 = arith.maximumf %105, %107 : vector<16x1xf32>
      %109 = arith.subf %105, %108 : vector<16x1xf32>
      %110 = math.exp %109 : vector<16x1xf32>
      %111 = vector.broadcast %108 : vector<16x1xf32> to vector<16x16xf32>
      %112 = arith.subf %103, %111 : vector<16x16xf32>
      %113 = math.exp %112 : vector<16x16xf32>
      %c2_63 = arith.constant 2 : index
      %c0_64 = arith.constant 0 : index
      %c0_65 = arith.constant 0 : index
      %114 = vector.load %arg13[%c2_63, %c0_64, %c0_65] : memref<4x16x1xf32, #tpu.memory_space<vmem>>, vector<1x16x1xf32>
      %115 = vector.shape_cast %114 : vector<1x16x1xf32> to vector<16x1xf32>
      %116 = arith.mulf %110, %115 : vector<16x1xf32>
      %cst_66 = arith.constant dense<0.000000e+00> : vector<16xf32>
      %117 = vector.multi_reduction <add>, %113, %cst_66 [1] : vector<16x16xf32> to vector<16xf32>
      %118 = vector.shape_cast %117 : vector<16xf32> to vector<16x1xf32>
      %119 = arith.addf %116, %118 : vector<16x1xf32>
      %c2_67 = arith.constant 2 : index
      %c0_68 = arith.constant 0 : index
      %c0_69 = arith.constant 0 : index
      %120 = vector.load %arg13[%c2_67, %c0_68, %c0_69] : memref<4x16x1xf32, #tpu.memory_space<vmem>>, vector<1x16x1xf32>
      %121 = vector.shape_cast %120 : vector<1x16x1xf32> to vector<16x1xf32>
      %122 = vector.shape_cast %119 : vector<16x1xf32> to vector<1x16x1xf32>
      tpu.vector_store %arg13[%c2_67, %c0_68, %c0_69], %122 {strides = array<i32>} : memref<4x16x1xf32, #tpu.memory_space<vmem>>, vector<1x16x1xf32>,
      %123 = arith.truncf %113 : vector<16x16xf32> to vector<16x16xbf16>
      %124 = vector.extract_strided_slice %21 {offsets = [0, 16], sizes = [16, 8], strides = [1, 1]} : vector<16x32xbf16> to vector<16x8xbf16>
      %cst_70 = arith.constant dense<0.000000e+00> : vector<16x8xf32>
      %125 = tpu.matmul %123, %124, %cst_70 {dimension_numbers = #tpu.dot_dimension_numbers<[1], [0], [0], [1], [0, 0, 1, 1], [], []>} : vector<16x16xbf16>, vector<16x8xbf16>, vector<16x8xf32> -> vector<16x8xf32>
      %c0_71 = arith.constant 0 : index
      %c16_72 = arith.constant 16 : index
      %126 = vector.load %arg14[%c0_71, %c16_72] : memref<16x32xf32, #tpu.memory_space<vmem>>, vector<16x8xf32>
      %127 = vector.broadcast %110 : vector<16x1xf32> to vector<16x8xf32>
      %128 = arith.mulf %127, %126 : vector<16x8xf32>
      %129 = arith.addf %128, %125 : vector<16x8xf32>
      %c0_73 = arith.constant 0 : index
      %c16_74 = arith.constant 16 : index
      %130 = vector.load %arg14[%c0_73, %c16_74] : memref<16x32xf32, #tpu.memory_space<vmem>>, vector<16x8xf32>
      tpu.vector_store %arg14[%c0_73, %c16_74], %129 {strides = array<i32>} : memref<16x32xf32, #tpu.memory_space<vmem>>, vector<16x8xf32>,
      %c2_75 = arith.constant 2 : index
      %c0_76 = arith.constant 0 : index
      %c0_77 = arith.constant 0 : index
      %131 = vector.load %arg12[%c2_75, %c0_76, %c0_77] : memref<4x16x1xf32, #tpu.memory_space<vmem>>, vector<1x16x1xf32>
      %132 = vector.shape_cast %131 : vector<1x16x1xf32> to vector<16x1xf32>
      %133 = vector.shape_cast %108 : vector<16x1xf32> to vector<1x16x1xf32>
      tpu.vector_store %arg12[%c2_75, %c0_76, %c0_77], %133 {strides = array<i32>} : memref<4x16x1xf32, #tpu.memory_space<vmem>>, vector<1x16x1xf32>,
      %c0_78 = arith.constant 0 : index
      %c24 = arith.constant 24 : index
      %134 = vector.load %arg11[%c0_78, %c24] : memref<16x32xbf16, #tpu.memory_space<vmem>>, vector<16x8xbf16>
      %135 = vector.extract_strided_slice %18 {offsets = [0, 24], sizes = [16, 8], strides = [1, 1]} : vector<16x32xbf16> to vector<16x8xbf16>
      %cst_79 = arith.constant dense<0.000000e+00> : vector<16x16xf32>
      %136 = tpu.matmul %134, %135, %cst_79 {dimension_numbers = #tpu.dot_dimension_numbers<[1], [1], [0], [0], [0, 0, 1, 0], [], []>} : vector<16x8xbf16>, vector<16x8xbf16>, vector<16x16xf32> -> vector<16x16xf32>
      %cst_80 = arith.constant -1.000000e+04 : f32
      %137 = vector.broadcast %cst_80 : f32 to vector<16x16xf32>
      %138 = arith.select %28, %137, %136 : vector<16x16xi1>, vector<16x16xf32>
      %c3 = arith.constant 3 : index
      %c0_81 = arith.constant 0 : index
      %c0_82 = arith.constant 0 : index
      %139 = vector.load %arg12[%c3, %c0_81, %c0_82] : memref<4x16x1xf32, #tpu.memory_space<vmem>>, vector<1x16x1xf32>
      %140 = vector.shape_cast %139 : vector<1x16x1xf32> to vector<16x1xf32>
      %cst_83 = arith.constant dense<0xFF800000> : vector<16xf32>
      %141 = vector.multi_reduction <maximumf>, %138, %cst_83 [1] : vector<16x16xf32> to vector<16xf32>
      %142 = vector.shape_cast %141 : vector<16xf32> to vector<16x1xf32>
      %143 = arith.maximumf %140, %142 : vector<16x1xf32>
      %144 = arith.subf %140, %143 : vector<16x1xf32>
      %145 = math.exp %144 : vector<16x1xf32>
      %146 = vector.broadcast %143 : vector<16x1xf32> to vector<16x16xf32>
      %147 = arith.subf %138, %146 : vector<16x16xf32>
      %148 = math.exp %147 : vector<16x16xf32>
      %c3_84 = arith.constant 3 : index
      %c0_85 = arith.constant 0 : index
      %c0_86 = arith.constant 0 : index
      %149 = vector.load %arg13[%c3_84, %c0_85, %c0_86] : memref<4x16x1xf32, #tpu.memory_space<vmem>>, vector<1x16x1xf32>
      %150 = vector.shape_cast %149 : vector<1x16x1xf32> to vector<16x1xf32>
      %151 = arith.mulf %145, %150 : vector<16x1xf32>
      %cst_87 = arith.constant dense<0.000000e+00> : vector<16xf32>
      %152 = vector.multi_reduction <add>, %148, %cst_87 [1] : vector<16x16xf32> to vector<16xf32>
      %153 = vector.shape_cast %152 : vector<16xf32> to vector<16x1xf32>
      %154 = arith.addf %151, %153 : vector<16x1xf32>
      %c3_88 = arith.constant 3 : index
      %c0_89 = arith.constant 0 : index
      %c0_90 = arith.constant 0 : index
      %155 = vector.load %arg13[%c3_88, %c0_89, %c0_90] : memref<4x16x1xf32, #tpu.memory_space<vmem>>, vector<1x16x1xf32>
      %156 = vector.shape_cast %155 : vector<1x16x1xf32> to vector<16x1xf32>
      %157 = vector.shape_cast %154 : vector<16x1xf32> to vector<1x16x1xf32>
      tpu.vector_store %arg13[%c3_88, %c0_89, %c0_90], %157 {strides = array<i32>} : memref<4x16x1xf32, #tpu.memory_space<vmem>>, vector<1x16x1xf32>,
      %158 = arith.truncf %148 : vector<16x16xf32> to vector<16x16xbf16>
      %159 = vector.extract_strided_slice %21 {offsets = [0, 24], sizes = [16, 8], strides = [1, 1]} : vector<16x32xbf16> to vector<16x8xbf16>
      %cst_91 = arith.constant dense<0.000000e+00> : vector<16x8xf32>
      %160 = tpu.matmul %158, %159, %cst_91 {dimension_numbers = #tpu.dot_dimension_numbers<[1], [0], [0], [1], [0, 0, 1, 1], [], []>} : vector<16x16xbf16>, vector<16x8xbf16>, vector<16x8xf32> -> vector<16x8xf32>
      %c0_92 = arith.constant 0 : index
      %c24_93 = arith.constant 24 : index
      %161 = vector.load %arg14[%c0_92, %c24_93] : memref<16x32xf32, #tpu.memory_space<vmem>>, vector<16x8xf32>
      %162 = vector.broadcast %145 : vector<16x1xf32> to vector<16x8xf32>
      %163 = arith.mulf %162, %161 : vector<16x8xf32>
      %164 = arith.addf %163, %160 : vector<16x8xf32>
      %c0_94 = arith.constant 0 : index
      %c24_95 = arith.constant 24 : index
      %165 = vector.load %arg14[%c0_94, %c24_95] : memref<16x32xf32, #tpu.memory_space<vmem>>, vector<16x8xf32>
      tpu.vector_store %arg14[%c0_94, %c24_95], %164 {strides = array<i32>} : memref<16x32xf32, #tpu.memory_space<vmem>>, vector<16x8xf32>,
      %c3_96 = arith.constant 3 : index
      %c0_97 = arith.constant 0 : index
      %c0_98 = arith.constant 0 : index
      %166 = vector.load %arg12[%c3_96, %c0_97, %c0_98] : memref<4x16x1xf32, #tpu.memory_space<vmem>>, vector<1x16x1xf32>
      %167 = vector.shape_cast %166 : vector<1x16x1xf32> to vector<16x1xf32>
      %168 = vector.shape_cast %143 : vector<16x1xf32> to vector<1x16x1xf32>
      tpu.vector_store %arg12[%c3_96, %c0_97, %c0_98], %168 {strides = array<i32>} : memref<4x16x1xf32, #tpu.memory_space<vmem>>, vector<1x16x1xf32>,
    } else {
    }
    %c1_i32 = arith.constant 1 : i32
    %9 = arith.cmpi eq, %arg2, %c1_i32 : i32
    %10 = arith.extui %9 : i1 to i32
    %c0_i32_4 = arith.constant 0 : i32
    %11 = arith.cmpi ne, %10, %c0_i32_4 : i32
    scf.if %11 {
      %c0 = arith.constant 0 : index
      %c0_5 = arith.constant 0 : index
      %12 = vector.load %arg14[%c0, %c0_5] : memref<16x32xf32, #tpu.memory_space<vmem>>, vector<16x8xf32>
      %c0_6 = arith.constant 0 : index
      %c0_7 = arith.constant 0 : index
      %c0_8 = arith.constant 0 : index
      %13 = vector.load %arg13[%c0_6, %c0_7, %c0_8] : memref<4x16x1xf32, #tpu.memory_space<vmem>>, vector<1x16x1xf32>
      %14 = vector.shape_cast %13 : vector<1x16x1xf32> to vector<16x1xf32>
      %15 = tpu.reciprocal %14 {approx = true} : vector<16x1xf32> -> vector<16x1xf32>
      %16 = vector.broadcast %15 : vector<16x1xf32> to vector<16x8xf32>
      %17 = arith.mulf %12, %16 : vector<16x8xf32>
      %c0_9 = arith.constant 0 : index
      %c0_10 = arith.constant 0 : index
      %18 = vector.load %arg14[%c0_9, %c0_10] : memref<16x32xf32, #tpu.memory_space<vmem>>, vector<16x8xf32>
      tpu.vector_store %arg14[%c0_9, %c0_10], %17 {strides = array<i32>} : memref<16x32xf32, #tpu.memory_space<vmem>>, vector<16x8xf32>,
      %c0_11 = arith.constant 0 : index
      %c8 = arith.constant 8 : index
      %19 = vector.load %arg14[%c0_11, %c8] : memref<16x32xf32, #tpu.memory_space<vmem>>, vector<16x8xf32>
      %c1 = arith.constant 1 : index
      %c0_12 = arith.constant 0 : index
      %c0_13 = arith.constant 0 : index
      %20 = vector.load %arg13[%c1, %c0_12, %c0_13] : memref<4x16x1xf32, #tpu.memory_space<vmem>>, vector<1x16x1xf32>
      %21 = vector.shape_cast %20 : vector<1x16x1xf32> to vector<16x1xf32>
      %22 = tpu.reciprocal %21 {approx = true} : vector<16x1xf32> -> vector<16x1xf32>
      %23 = vector.broadcast %22 : vector<16x1xf32> to vector<16x8xf32>
      %24 = arith.mulf %19, %23 : vector<16x8xf32>
      %c0_14 = arith.constant 0 : index
      %c8_15 = arith.constant 8 : index
      %25 = vector.load %arg14[%c0_14, %c8_15] : memref<16x32xf32, #tpu.memory_space<vmem>>, vector<16x8xf32>
      tpu.vector_store %arg14[%c0_14, %c8_15], %24 {strides = array<i32>} : memref<16x32xf32, #tpu.memory_space<vmem>>, vector<16x8xf32>,
      %c0_16 = arith.constant 0 : index
      %c16 = arith.constant 16 : index
      %26 = vector.load %arg14[%c0_16, %c16] : memref<16x32xf32, #tpu.memory_space<vmem>>, vector<16x8xf32>
      %c2 = arith.constant 2 : index
      %c0_17 = arith.constant 0 : index
      %c0_18 = arith.constant 0 : index
      %27 = vector.load %arg13[%c2, %c0_17, %c0_18] : memref<4x16x1xf32, #tpu.memory_space<vmem>>, vector<1x16x1xf32>
      %28 = vector.shape_cast %27 : vector<1x16x1xf32> to vector<16x1xf32>
      %29 = tpu.reciprocal %28 {approx = true} : vector<16x1xf32> -> vector<16x1xf32>
      %30 = vector.broadcast %29 : vector<16x1xf32> to vector<16x8xf32>
      %31 = arith.mulf %26, %30 : vector<16x8xf32>
      %c0_19 = arith.constant 0 : index
      %c16_20 = arith.constant 16 : index
      %32 = vector.load %arg14[%c0_19, %c16_20] : memref<16x32xf32, #tpu.memory_space<vmem>>, vector<16x8xf32>
      tpu.vector_store %arg14[%c0_19, %c16_20], %31 {strides = array<i32>} : memref<16x32xf32, #tpu.memory_space<vmem>>, vector<16x8xf32>,
      %c0_21 = arith.constant 0 : index
      %c24 = arith.constant 24 : index
      %33 = vector.load %arg14[%c0_21, %c24] : memref<16x32xf32, #tpu.memory_space<vmem>>, vector<16x8xf32>
      %c3 = arith.constant 3 : index
      %c0_22 = arith.constant 0 : index
      %c0_23 = arith.constant 0 : index
      %34 = vector.load %arg13[%c3, %c0_22, %c0_23] : memref<4x16x1xf32, #tpu.memory_space<vmem>>, vector<1x16x1xf32>
      %35 = vector.shape_cast %34 : vector<1x16x1xf32> to vector<16x1xf32>
      %36 = tpu.reciprocal %35 {approx = true} : vector<16x1xf32> -> vector<16x1xf32>
      %37 = vector.broadcast %36 : vector<16x1xf32> to vector<16x8xf32>
      %38 = arith.mulf %33, %37 : vector<16x8xf32>
      %c0_24 = arith.constant 0 : index
      %c24_25 = arith.constant 24 : index
      %39 = vector.load %arg14[%c0_24, %c24_25] : memref<16x32xf32, #tpu.memory_space<vmem>>, vector<16x8xf32>
      tpu.vector_store %arg14[%c0_24, %c24_25], %38 {strides = array<i32>} : memref<16x32xf32, #tpu.memory_space<vmem>>, vector<16x8xf32>,
      %c0_26 = arith.constant 0 : index
      %c0_27 = arith.constant 0 : index
      %40 = vector.load %arg14[%c0_26, %c0_27] : memref<16x32xf32, #tpu.memory_space<vmem>>, vector<16x32xf32>
      %41 = arith.truncf %40 : vector<16x32xf32> to vector<16x32xbf16>
      %c0_28 = arith.constant 0 : index
      %c0_29 = arith.constant 0 : index
      %42 = vector.load %arg9[%c0_28, %c0_29] : memref<32x32xbf16, #tpu.memory_space<vmem>>, vector<32x32xbf16>
      %cst = arith.constant dense<0.000000e+00> : vector<16x32xf32>
      %43 = tpu.matmul %41, %42, %cst {dimension_numbers = #tpu.dot_dimension_numbers<[1], [0], [0], [1], [0, 0, 1, 1], [], []>} : vector<16x32xbf16>, vector<32x32xbf16>, vector<16x32xf32> -> vector<16x32xf32>
      %c0_30 = arith.constant 0 : index
      %c0_31 = arith.constant 0 : index
      %c0_32 = arith.constant 0 : index
      %44 = vector.load %arg10[%c0_30, %c0_31, %c0_32] : memref<1x16x32xf32, #tpu.memory_space<vmem>>, vector<1x16x32xf32>
      %45 = vector.shape_cast %44 : vector<1x16x32xf32> to vector<16x32xf32>
      %46 = vector.shape_cast %43 : vector<16x32xf32> to vector<1x16x32xf32>
      tpu.vector_store %arg10[%c0_30, %c0_31, %c0_32], %46 {strides = array<i32>} : memref<1x16x32xf32, #tpu.memory_space<vmem>>, vector<1x16x32xf32>,
    } else {
    }
    return
  }
  func.func @transform_0(%arg0: i32, %arg1: i32, %arg2: i32) -> (i32, i32, i32) {
    %c0_i32 = arith.constant 0 : i32
    %c0_i32_0 = arith.constant 0 : i32
    return %arg0, %arg1, %c0_i32 : i32, i32, i32
  }
  func.func @transform_1(%arg0: i32, %arg1: i32, %arg2: i32) -> (i32, i32) {
    %c0_i32 = arith.constant 0 : i32
    %c0_i32_0 = arith.constant 0 : i32
    return %arg1, %c0_i32 : i32, i32
  }
  func.func @transform_2(%arg0: i32, %arg1: i32, %arg2: i32) -> (i32, i32, i32) {
    %c0_i32 = arith.constant 0 : i32
    %c0_i32_0 = arith.constant 0 : i32
    return %arg0, %arg2, %c0_i32 : i32, i32, i32
  }
  func.func @transform_3(%arg0: i32, %arg1: i32, %arg2: i32) -> (i32, i32) {
    %c0_i32 = arith.constant 0 : i32
    %c0_i32_0 = arith.constant 0 : i32
    return %arg2, %c0_i32 : i32, i32
  }
  func.func @transform_4(%arg0: i32, %arg1: i32, %arg2: i32) -> (i32, i32) {
    %c0_i32 = arith.constant 0 : i32
    %c0_i32_0 = arith.constant 0 : i32
    %c0_i32_1 = arith.constant 0 : i32
    return %c0_i32, %c0_i32_0 : i32, i32
  }
  func.func @transform_5(%arg0: i32, %arg1: i32, %arg2: i32) -> (i32, i32) {
    %c0_i32 = arith.constant 0 : i32
    %c0_i32_0 = arith.constant 0 : i32
    %c0_i32_1 = arith.constant 0 : i32
    return %c0_i32, %c0_i32_0 : i32, i32
  }
  func.func @transform_6(%arg0: i32, %arg1: i32, %arg2: i32) -> (i32, i32) {
    %c0_i32 = arith.constant 0 : i32
    %c0_i32_0 = arith.constant 0 : i32
    %c0_i32_1 = arith.constant 0 : i32
    return %c0_i32, %c0_i32_0 : i32, i32
  }
  func.func @transform_7(%arg0: i32, %arg1: i32, %arg2: i32) -> (i32, i32, i32) {
    %c0_i32 = arith.constant 0 : i32
    %c0_i32_0 = arith.constant 0 : i32
    return %arg0, %arg1, %c0_i32 : i32, i32, i32
  }
}

</mosaic_0001>

<llo_original>
// kernel: tpu_custom_call.1
$region0: #{tpu_custom_call.1}
  #allocation0 [shape = 'u32[]', space=smem, size = 0x4, offset = 0x4, fixed_abs, tag = 'smem constant byte address 0x4 - core index']
  #allocation1 [shape = 'u32[72,128]{1,0:T(1,128)}', space=vmem, size = 0x9000, scoped, tag = 'internal scratch']
  #allocation2 [shape = 'bf16[16,32]{1,0:T(8,128)(2,1)}', space=vmem, size = 0x1000, scoped, tag = 'scratch operand']
  #allocation3 [shape = 'f32[4,16,1]{2,1,0:T(8,128)}', space=vmem, size = 0x8000, scoped, tag = 'scratch operand']
  #allocation4 [shape = 'f32[4,16,1]{2,1,0:T(8,128)}', space=vmem, size = 0x8000, scoped, tag = 'scratch operand']
  #allocation5 [shape = 'f32[16,32]{1,0:T(8,128)}', space=vmem, size = 0x2000, scoped, tag = 'scratch operand']
  %s0 = inlined_call_operand.hbm [shape: bf16[2,32,32], index: 0, kind: input, shape index: {}]
  %s1 = inlined_call_operand.hbm [shape: bf16[32,32], index: 1, kind: input, shape index: {}]
  %s2 = inlined_call_operand.hbm [shape: bf16[2,32,32], index: 2, kind: input, shape index: {}]
  %s3 = inlined_call_operand.hbm [shape: bf16[32,32], index: 3, kind: input, shape index: {}]
  %s4 = inlined_call_operand.hbm [shape: bf16[32,64], index: 4, kind: input, shape index: {}]
  %s5 = inlined_call_operand.hbm [shape: bf16[32,32], index: 5, kind: input, shape index: {}]
  %s6 = inlined_call_operand.hbm [shape: bf16[32,32], index: 6, kind: input, shape index: {}]
  %s7 = inlined_call_operand.hbm [shape: f32[2,32,32], index: 7, kind: output, shape index: {}]
  %s8 = sld [smem:[#allocation0]]
  $region101: #{tpu_custom_call.1} parent=0
    _
  %s10 = ssub.s32 1, %s8
  %s11 = scalar_select 0, %s10, %s8
  $region1: #{tpu_custom_call.1} parent=0
    #allocation6 [shape = 'u8[8192]{0}', space=vmem, size = 0x2000, scoped, tag = 'input window, operand 0']
    #allocation7 [shape = 's32[2]{0}', space=sflag, size = 0x8, scoped, tag = 'scoped memory for tpu_custom_call.1']
    #allocation8 [shape = 's32[2]{0}', space=sflag, size = 0x8, scoped, tag = 'scoped memory for tpu_custom_call.1']
    #allocation9 [shape = 'u8[8192]{0}', space=vmem, size = 0x2000, scoped, tag = 'input window, operand 1']
    #allocation10 [shape = 's32[2]{0}', space=sflag, size = 0x8, scoped, tag = 'scoped memory for tpu_custom_call.1']
    #allocation11 [shape = 'u8[8192]{0}', space=vmem, size = 0x2000, scoped, tag = 'input window, operand 2']
    #allocation12 [shape = 'u8[8192]{0}', space=vmem, size = 0x2000, scoped, tag = 'input window, operand 3']
    #allocation13 [shape = 's32[2]{0}', space=sflag, size = 0x8, scoped, tag = 'scoped memory for tpu_custom_call.1']
    #allocation14 [shape = 'u8[8192]{0}', space=vmem, size = 0x2000, scoped, tag = 'input window, operand 4, single buffered']
    #allocation15 [shape = 'u8[8192]{0}', space=vmem, size = 0x2000, scoped, tag = 'input window, operand 5, single buffered']
    #allocation16 [shape = 's32[1]{0}', space=sflag, size = 0x4, scoped, tag = 'scoped memory for tpu_custom_call.1']
    #allocation17 [shape = 'u8[8192]{0}', space=vmem, size = 0x2000, scoped, tag = 'input window, operand 6, single buffered']
    #allocation18 [shape = 'u8[16384]{0}', space=vmem, size = 0x4000, scoped, tag = 'output window, operand 0']
    %12 = vsyncpa [#allocation7], 0
    %s13 = scalar_lea.sflag [#allocation7], 1
    %14 = vsyncpa %s13, 0
    %15 = vsyncpa [#allocation10], 0
    %s16 = scalar_lea.sflag [#allocation10], 1
    %17 = vsyncpa %s16, 0
    %18 = vsyncpa [#allocation13], 0
    %s19 = scalar_lea.sflag [#allocation13], 1
    %20 = vsyncpa %s19, 0
    %21 = vsyncpa [#allocation16], 0
    %22 = vsyncpa [#allocation8], 0
    %s23 = scalar_lea.sflag [#allocation8], 1
    %24 = vsyncpa %s23, 0
    loop: start=0, step=1, limit=10
    $region2: #{tpu_custom_call.1} parent=1 // loop_pre_header
      _
    $region3: #{tpu_custom_call.1} parent=1 // loop_header
      %s26 = sphi 0, %s30
      %p27 = scmp.ge.s32.totalorder %s26, 10
      %s33 = sphi 0, %s52
      %s34 = sphi 0, %s48
      %s35 = sphi 0, %s44
      %s36 = sphi 0, %s33
      %s37 = sphi 0, %s34
      %s38 = sphi 0, %s35
      %s39 = sphi 0, %s36
      %s40 = sphi 0, %s37
      %s41 = sphi 0, %s38
      %s57 = sphi 0, %s59
      %s60 = sphi 0, %s57
      %s61 = sphi 0, %s60
      %s77 = sphi 0, %s61
      %s83 = sphi 0, %s85
      %s86 = sphi 0, %s83
      %s87 = sphi 0, %s86
      %s103 = sphi 0, %s87
      %s111 = sphi 0, %s113
      %s114 = sphi 0, %s111
      %s115 = sphi 0, %s114
      %s131 = sphi 0, %s115
      %s137 = sphi 0, %s139
      %s140 = sphi 0, %s137
      %s141 = sphi 0, %s140
      %s157 = sphi 0, %s141
      %s161 = sphi 0, %s161
      %s163 = sphi 0, %s161
      %s164 = sphi 0, %s163
      %s178 = sphi 0, %s164
      %s182 = sphi 0, %s182
      %s184 = sphi 0, %s182
      %s185 = sphi 0, %s184
      %s199 = sphi 0, %s185
      %s203 = sphi 0, %s203
      %s205 = sphi 0, %s203
      %s206 = sphi 0, %s205
      %s220 = sphi 0, %s206
      %s228 = sphi 0, %s230
      %s231 = sphi 0, %s228
      %s232 = sphi 0, %s231
      %s248 = sphi 0, %s232
    $region4: #{tpu_custom_call.1} parent=1 // loop_header_branch
      %29 = sbr.rel (%p27) target = $region8
    $region5: #{tpu_custom_call.1} parent=1 // loop_body
      %s31 = ssub.s32 %s26, 1
      %s32 = ssub.s32 %s26, 2
      %s42 = sadd.s32 1, %s35
      %p43 = scmp.ge.s32.totalorder %s42, 2
      %s44 = scalar_select %p43, 0, %s42
      %s45 = sadd.s32 1, %s34
      %s46 = scalar_select %p43, %s45, %s34
      %p47 = scmp.ge.s32.totalorder %s46, 2
      %s48 = scalar_select %p47, 0, %s46
      %s49 = sadd.s32 1, %s33
      %s50 = scalar_select %p47, %s49, %s33
      %p51 = scmp.ge.s32.totalorder %s50, 2
      %s52 = scalar_select %p51, 0, %s50
      %s53 = ssub.s32 %s33, %s52
      %s54 = ssub.s32 %s34, %s48
      %s55 = sor.u32 %s53, %s54
      %p56 = scmp.eq.s32.totalorder %s55, 0
      %s58 = sadd.s32 %s57, 1
      %s59 = scalar_select %p56, %s57, %s58
      %p62 = pneg %p56
      %p63 = scmp.eq.s32.totalorder %s26, 7
      %p64 = por %p62, %p63
      %p65 = scmp.ne.s32.totalorder %s57, %s60
      %p66 = scmp.eq.s32.totalorder %s26, 0
      %p67 = por %p65, %p66
      %p68 = scmp.ne.s32.totalorder %s57, %s60
      %p69 = scmp.eq.s32.totalorder %s31, 7
      %p70 = por %p68, %p69
      %p71 = scmp.ne.s32.totalorder %s60, %s61
      %p72 = scmp.eq.s32.totalorder %s31, 0
      %p73 = por %p71, %p72
      %p74 = scmp.ne.s32.totalorder %s60, %s61
      %p75 = scmp.eq.s32.totalorder %s32, 7
      %p76 = por %p74, %p75
      %p78 = scmp.ne.s32.totalorder %s61, %s77
      %p79 = scmp.eq.s32.totalorder %s32, 0
      %p80 = por %p78, %p79
      %s81 = ssub.s32 %s34, %s48
      %p82 = scmp.eq.s32.totalorder %s81, 0
      %s84 = sadd.s32 %s83, 1
      %s85 = scalar_select %p82, %s83, %s84
      %p88 = pneg %p82
      %p89 = scmp.eq.s32.totalorder %s26, 7
      %p90 = por %p88, %p89
      %p91 = scmp.ne.s32.totalorder %s83, %s86
      %p92 = scmp.eq.s32.totalorder %s26, 0
      %p93 = por %p91, %p92
      %p94 = scmp.ne.s32.totalorder %s83, %s86
      %p95 = scmp.eq.s32.totalorder %s31, 7
      %p96 = por %p94, %p95
      %p97 = scmp.ne.s32.totalorder %s86, %s87
      %p98 = scmp.eq.s32.totalorder %s31, 0
      %p99 = por %p97, %p98
      %p100 = scmp.ne.s32.totalorder %s86, %s87
      %p101 = scmp.eq.s32.totalorder %s32, 7
      %p102 = por %p100, %p101
      %p104 = scmp.ne.s32.totalorder %s87, %s103
      %p105 = scmp.eq.s32.totalorder %s32, 0
      %p106 = por %p104, %p105
      %s107 = ssub.s32 %s33, %s52
      %s108 = ssub.s32 %s35, %s44
      %s109 = sor.u32 %s107, %s108
      %p110 = scmp.eq.s32.totalorder %s109, 0
      %s112 = sadd.s32 %s111, 1
      %s113 = scalar_select %p110, %s111, %s112
      %p116 = pneg %p110
      %p117 = scmp.eq.s32.totalorder %s26, 7
      %p118 = por %p116, %p117
      %p119 = scmp.ne.s32.totalorder %s111, %s114
      %p120 = scmp.eq.s32.totalorder %s26, 0
      %p121 = por %p119, %p120
      %p122 = scmp.ne.s32.totalorder %s111, %s114
      %p123 = scmp.eq.s32.totalorder %s31, 7
      %p124 = por %p122, %p123
      %p125 = scmp.ne.s32.totalorder %s114, %s115
      %p126 = scmp.eq.s32.totalorder %s31, 0
      %p127 = por %p125, %p126
      %p128 = scmp.ne.s32.totalorder %s114, %s115
      %p129 = scmp.eq.s32.totalorder %s32, 7
      %p130 = por %p128, %p129
      %p132 = scmp.ne.s32.totalorder %s115, %s131
      %p133 = scmp.eq.s32.totalorder %s32, 0
      %p134 = por %p132, %p133
      %s135 = ssub.s32 %s35, %s44
      %p136 = scmp.eq.s32.totalorder %s135, 0
      %s138 = sadd.s32 %s137, 1
      %s139 = scalar_select %p136, %s137, %s138
      %p142 = pneg %p136
      %p143 = scmp.eq.s32.totalorder %s26, 7
      %p144 = por %p142, %p143
      %p145 = scmp.ne.s32.totalorder %s137, %s140
      %p146 = scmp.eq.s32.totalorder %s26, 0
      %p147 = por %p145, %p146
      %p148 = scmp.ne.s32.totalorder %s137, %s140
      %p149 = scmp.eq.s32.totalorder %s31, 7
      %p150 = por %p148, %p149
      %p151 = scmp.ne.s32.totalorder %s140, %s141
      %p152 = scmp.eq.s32.totalorder %s31, 0
      %p153 = por %p151, %p152
      %p154 = scmp.ne.s32.totalorder %s140, %s141
      %p155 = scmp.eq.s32.totalorder %s32, 7
      %p156 = por %p154, %p155
      %p158 = scmp.ne.s32.totalorder %s141, %s157
      %p159 = scmp.eq.s32.totalorder %s32, 0
      %p160 = por %p158, %p159
      %s162 = sadd.s32 %s161, 1
      %p165 = scmp.eq.s32.totalorder %s26, 7
      %p166 = scmp.ne.s32.totalorder %s161, %s163
      %p167 = scmp.eq.s32.totalorder %s26, 0
      %p168 = por %p166, %p167
      %p169 = scmp.ne.s32.totalorder %s161, %s163
      %p170 = scmp.eq.s32.totalorder %s31, 7
      %p171 = por %p169, %p170
      %p172 = scmp.ne.s32.totalorder %s163, %s164
      %p173 = scmp.eq.s32.totalorder %s31, 0
      %p174 = por %p172, %p173
      %p175 = scmp.ne.s32.totalorder %s163, %s164
      %p176 = scmp.eq.s32.totalorder %s32, 7
      %p177 = por %p175, %p176
      %p179 = scmp.ne.s32.totalorder %s164, %s178
      %p180 = scmp.eq.s32.totalorder %s32, 0
      %p181 = por %p179, %p180
      %s183 = sadd.s32 %s182, 1
      %p186 = scmp.eq.s32.totalorder %s26, 7
      %p187 = scmp.ne.s32.totalorder %s182, %s184
      %p188 = scmp.eq.s32.totalorder %s26, 0
      %p189 = por %p187, %p188
      %p190 = scmp.ne.s32.totalorder %s182, %s184
      %p191 = scmp.eq.s32.totalorder %s31, 7
      %p192 = por %p190, %p191
      %p193 = scmp.ne.s32.totalorder %s184, %s185
      %p194 = scmp.eq.s32.totalorder %s31, 0
      %p195 = por %p193, %p194
      %p196 = scmp.ne.s32.totalorder %s184, %s185
      %p197 = scmp.eq.s32.totalorder %s32, 7
      %p198 = por %p196, %p197
      %p200 = scmp.ne.s32.totalorder %s185, %s199
      %p201 = scmp.eq.s32.totalorder %s32, 0
      %p202 = por %p200, %p201
      %s204 = sadd.s32 %s203, 1
      %p207 = scmp.eq.s32.totalorder %s26, 7
      %p208 = scmp.ne.s32.totalorder %s203, %s205
      %p209 = scmp.eq.s32.totalorder %s26, 0
      %p210 = por %p208, %p209
      %p211 = scmp.ne.s32.totalorder %s203, %s205
      %p212 = scmp.eq.s32.totalorder %s31, 7
      %p213 = por %p211, %p212
      %p214 = scmp.ne.s32.totalorder %s205, %s206
      %p215 = scmp.eq.s32.totalorder %s31, 0
      %p216 = por %p214, %p215
      %p217 = scmp.ne.s32.totalorder %s205, %s206
      %p218 = scmp.eq.s32.totalorder %s32, 7
      %p219 = por %p217, %p218
      %p221 = scmp.ne.s32.totalorder %s206, %s220
      %p222 = scmp.eq.s32.totalorder %s32, 0
      %p223 = por %p221, %p222
      %s224 = ssub.s32 %s33, %s52
      %s225 = ssub.s32 %s34, %s48
      %s226 = sor.u32 %s224, %s225
      %p227 = scmp.eq.s32.totalorder %s226, 0
      %s229 = sadd.s32 %s228, 1
      %s230 = scalar_select %p227, %s228, %s229
      %p233 = pneg %p227
      %p234 = scmp.eq.s32.totalorder %s26, 7
      %p235 = por %p233, %p234
      %p236 = scmp.ne.s32.totalorder %s228, %s231
      %p237 = scmp.eq.s32.totalorder %s26, 0
      %p238 = por %p236, %p237
      %p239 = scmp.ne.s32.totalorder %s228, %s231
      %p240 = scmp.eq.s32.totalorder %s31, 7
      %p241 = por %p239, %p240
      %p242 = scmp.ne.s32.totalorder %s231, %s232
      %p243 = scmp.eq.s32.totalorder %s31, 0
      %p244 = por %p242, %p243
      %p245 = scmp.ne.s32.totalorder %s231, %s232
      %p246 = scmp.eq.s32.totalorder %s32, 7
      %p247 = por %p245, %p246
      %p249 = scmp.ne.s32.totalorder %s232, %s248
      %p250 = scmp.eq.s32.totalorder %s32, 0
      %p251 = por %p249, %p250
      %p252 = scmp.le.s32.totalorder 1, %s26
      %p253 = scmp.lt.s32.totalorder %s26, 9
      %p254 = pnand %p252, %p253
      %p255 = pneg %p254
      // Predicated region
      $region9: #{tpu_custom_call.1} parent=5 // pred_check
        _
      $region10: #{tpu_custom_call.1} parent=5 // pred_check_branch
        %257 = sbr.rel (%p254) target = $region12
      $region11: #{tpu_custom_call.1} parent=5 // pred_region
        %s258 = ssub.s32 %s26, 1
        // Predicated region
        $region13: #{tpu_custom_call.1} parent=11 // pred_check
          %p259 = pneg %p174
        $region14: #{tpu_custom_call.1} parent=11 // pred_check_branch
          %261 = sbr.rel (%p259) target = $region16
        $region15: #{tpu_custom_call.1} parent=11 // pred_region
          %263 = vsyncadd [#allocation13], 0
          %s264 = sshll.u32 %s4, 4
          %s265 = int_to_ptr.hbm [resolvable:$true] %s264
          %s266 = sshll.u32 [#allocation14], 4
          %s267 = int_to_ptr.vmem [resolvable:$true] %s266
          %272 = dma.hbm_to_vmem [thread:$0]  %s265, 256, %s267, [#allocation13], 64, 64, 4
        $region16: #{tpu_custom_call.1} parent=11 // pred_fallthru
          _
        // Predicated region
        $region17: #{tpu_custom_call.1} parent=11 // pred_check
          %p273 = pneg %p195
        $region18: #{tpu_custom_call.1} parent=11 // pred_check_branch
          %275 = sbr.rel (%p273) target = $region20
        $region19: #{tpu_custom_call.1} parent=11 // pred_region
          %277 = vsyncadd [#allocation16], 0
          %s278 = sshll.u32 %s5, 4
          %s279 = int_to_ptr.hbm [resolvable:$true] %s278
          %s280 = sshll.u32 [#allocation15], 4
          %s281 = int_to_ptr.vmem [resolvable:$true] %s280
          %286 = dma.hbm_to_vmem [thread:$0]  %s279, 256, %s281, [#allocation16], 64, 64, 4
        $region20: #{tpu_custom_call.1} parent=11 // pred_fallthru
          _
        // Predicated region
        $region21: #{tpu_custom_call.1} parent=11 // pred_check
          %p287 = pneg %p216
        $region22: #{tpu_custom_call.1} parent=11 // pred_check_branch
          %289 = sbr.rel (%p287) target = $region24
        $region23: #{tpu_custom_call.1} parent=11 // pred_region
          %291 = vsyncadd [#allocation16], 0
          %s292 = sshll.u32 %s6, 4
          %s293 = int_to_ptr.hbm [resolvable:$true] %s292
          %s294 = sshll.u32 [#allocation17], 4
          %s295 = int_to_ptr.vmem [resolvable:$true] %s294
          %300 = dma.hbm_to_vmem [thread:$0]  %s293, 256, %s295, [#allocation16], 64, 64, 4
        $region24: #{tpu_custom_call.1} parent=11 // pred_fallthru
          _
      $region12: #{tpu_custom_call.1} parent=5 // pred_fallthru
        _
      %p301 = scmp.lt.s32.totalorder %s26, 8
      // Predicated region
      $region25: #{tpu_custom_call.1} parent=5 // pred_check
        %p302 = pneg %p301
      $region26: #{tpu_custom_call.1} parent=5 // pred_check_branch
        %304 = sbr.rel (%p302) target = $region28
      $region27: #{tpu_custom_call.1} parent=5 // pred_region
        // Predicated region
        $region29: #{tpu_custom_call.1} parent=27 // pred_check
          %p305 = pneg %p67
        $region30: #{tpu_custom_call.1} parent=27 // pred_check_branch
          %307 = sbr.rel (%p305) target = $region32
        $region31: #{tpu_custom_call.1} parent=27 // pred_region
          %s308 = sand.u32 %s57, 1
          %s309 = scalar_lea.sflag [#allocation7], %s308
          %s310 = sand.u32 %s57, 1
          %s311 = smul.addr %s310, 8
          %s312 = scalar_lea.vmem [#allocation6], %s311
          %s313 = smul.u32 2, %s34
          %315 = vsyncadd %s309, 0
          %s316 = smul.addr %s33, 4
          %s317 = sadd.s32 %s313, %s316
          %s318 = smul.addr %s317, 4
          %s319 = scalar_lea.hbm %s0, %s318
          %s320 = sshll.u32 %s319, 4
          %s321 = int_to_ptr.hbm [resolvable:$true] %s320
          %s322 = sshll.u32 %s312, 4
          %s323 = int_to_ptr.vmem [resolvable:$true] %s322
          %328 = dma.hbm_to_vmem [thread:$0]  %s321, 128, %s323, %s309, 64, 64, 4
        $region32: #{tpu_custom_call.1} parent=27 // pred_fallthru
          _
        // Predicated region
        $region33: #{tpu_custom_call.1} parent=27 // pred_check
          %p329 = pneg %p93
        $region34: #{tpu_custom_call.1} parent=27 // pred_check_branch
          %331 = sbr.rel (%p329) target = $region36
        $region35: #{tpu_custom_call.1} parent=27 // pred_region
          %s332 = sand.u32 %s26, 1
          %s333 = scalar_lea.sflag [#allocation10], %s332
          %s334 = sand.u32 %s83, 1
          %s335 = smul.addr %s334, 8
          %s336 = scalar_lea.vmem [#allocation9], %s335
          %s337 = smul.u32 2, %s34
          %339 = vsyncadd %s333, 0
          %s340 = smul.addr %s337, 4
          %s341 = scalar_lea.hbm %s1, %s340
          %s342 = sshll.u32 %s341, 4
          %s343 = int_to_ptr.hbm [resolvable:$true] %s342
          %s344 = sshll.u32 %s336, 4
          %s345 = int_to_ptr.vmem [resolvable:$true] %s344
          %350 = dma.hbm_to_vmem [thread:$0]  %s343, 128, %s345, %s333, 64, 64, 4
        $region36: #{tpu_custom_call.1} parent=27 // pred_fallthru
          _
        // Predicated region
        $region37: #{tpu_custom_call.1} parent=27 // pred_check
          %p351 = pneg %p121
        $region38: #{tpu_custom_call.1} parent=27 // pred_check_branch
          %353 = sbr.rel (%p351) target = $region40
        $region39: #{tpu_custom_call.1} parent=27 // pred_region
          %s354 = sand.u32 %s26, 1
          %s355 = scalar_lea.sflag [#allocation10], %s354
          %s356 = sand.u32 %s111, 1
          %s357 = smul.addr %s356, 8
          %s358 = scalar_lea.vmem [#allocation11], %s357
          %s359 = smul.u32 2, %s35
          %361 = vsyncadd %s355, 0
          %s362 = smul.addr %s33, 4
          %s363 = sadd.s32 %s359, %s362
          %s364 = smul.addr %s363, 4
          %s365 = scalar_lea.hbm %s2, %s364
          %s366 = sshll.u32 %s365, 4
          %s367 = int_to_ptr.hbm [resolvable:$true] %s366
          %s368 = sshll.u32 %s358, 4
          %s369 = int_to_ptr.vmem [resolvable:$true] %s368
          %374 = dma.hbm_to_vmem [thread:$0]  %s367, 128, %s369, %s355, 64, 64, 4
        $region40: #{tpu_custom_call.1} parent=27 // pred_fallthru
          _
        // Predicated region
        $region41: #{tpu_custom_call.1} parent=27 // pred_check
          %p375 = pneg %p147
        $region42: #{tpu_custom_call.1} parent=27 // pred_check_branch
          %377 = sbr.rel (%p375) target = $region44
        $region43: #{tpu_custom_call.1} parent=27 // pred_region
          %s378 = sand.u32 %s26, 1
          %s379 = scalar_lea.sflag [#allocation13], %s378
          %s380 = sand.u32 %s137, 1
          %s381 = smul.addr %s380, 8
          %s382 = scalar_lea.vmem [#allocation12], %s381
          %s383 = smul.u32 2, %s35
          %385 = vsyncadd %s379, 0
          %s386 = smul.addr %s383, 4
          %s387 = scalar_lea.hbm %s3, %s386
          %s388 = sshll.u32 %s387, 4
          %s389 = int_to_ptr.hbm [resolvable:$true] %s388
          %s390 = sshll.u32 %s382, 4
          %s391 = int_to_ptr.vmem [resolvable:$true] %s390
          %396 = dma.hbm_to_vmem [thread:$0]  %s389, 128, %s391, %s379, 64, 64, 4
        $region44: #{tpu_custom_call.1} parent=27 // pred_fallthru
          _
      $region28: #{tpu_custom_call.1} parent=5 // pred_fallthru
        _
      %p397 = scmp.le.s32.totalorder 1, %s26
      %p398 = scmp.lt.s32.totalorder %s26, 9
      %p399 = pnand %p397, %p398
      %p400 = pneg %p399
      // Predicated region
      $region45: #{tpu_custom_call.1} parent=5 // pred_check
        _
      $region46: #{tpu_custom_call.1} parent=5 // pred_check_branch
        %402 = sbr.rel (%p399) target = $region48
      $region47: #{tpu_custom_call.1} parent=5 // pred_region
        %s403 = ssub.s32 %s26, 1
        %s404 = sand.u32 %s60, 1
        %s405 = scalar_lea.sflag [#allocation7], %s404
        %s406 = sand.u32 %s60, 1
        %s407 = smul.addr %s406, 8
        %s408 = scalar_lea.vmem [#allocation6], %s407
        // Predicated region
        $region49: #{tpu_custom_call.1} parent=47 // pred_check
          %p409 = pneg %p73
        $region50: #{tpu_custom_call.1} parent=47 // pred_check_branch
          %411 = sbr.rel (%p409) target = $region52
        $region51: #{tpu_custom_call.1} parent=47 // pred_region
          %413 = dma.done %s405, 128
        $region52: #{tpu_custom_call.1} parent=47 // pred_fallthru
          _
        %s414 = sand.u32 %s31, 1
        %s415 = scalar_lea.sflag [#allocation10], %s414
        %s416 = sand.u32 %s86, 1
        %s417 = smul.addr %s416, 8
        %s418 = scalar_lea.vmem [#allocation9], %s417
        // Predicated region
        $region53: #{tpu_custom_call.1} parent=47 // pred_check
          %p419 = pneg %p99
        $region54: #{tpu_custom_call.1} parent=47 // pred_check_branch
          %421 = sbr.rel (%p419) target = $region56
        $region55: #{tpu_custom_call.1} parent=47 // pred_region
          %423 = dma.done %s415, 128
        $region56: #{tpu_custom_call.1} parent=47 // pred_fallthru
          _
        %s424 = sand.u32 %s31, 1
        %s425 = scalar_lea.sflag [#allocation10], %s424
        %s426 = sand.u32 %s114, 1
        %s427 = smul.addr %s426, 8
        %s428 = scalar_lea.vmem [#allocation11], %s427
        // Predicated region
        $region57: #{tpu_custom_call.1} parent=47 // pred_check
          %p429 = pneg %p127
        $region58: #{tpu_custom_call.1} parent=47 // pred_check_branch
          %431 = sbr.rel (%p429) target = $region60
        $region59: #{tpu_custom_call.1} parent=47 // pred_region
          %433 = dma.done %s425, 128
        $region60: #{tpu_custom_call.1} parent=47 // pred_fallthru
          _
        %s434 = sand.u32 %s31, 1
        %s435 = scalar_lea.sflag [#allocation13], %s434
        %s436 = sand.u32 %s140, 1
        %s437 = smul.addr %s436, 8
        %s438 = scalar_lea.vmem [#allocation12], %s437
        // Predicated region
        $region61: #{tpu_custom_call.1} parent=47 // pred_check
          %p439 = pneg %p153
        $region62: #{tpu_custom_call.1} parent=47 // pred_check_branch
          %441 = sbr.rel (%p439) target = $region64
        $region63: #{tpu_custom_call.1} parent=47 // pred_region
          %443 = dma.done %s435, 128
        $region64: #{tpu_custom_call.1} parent=47 // pred_fallthru
          _
        // Predicated region
        $region65: #{tpu_custom_call.1} parent=47 // pred_check
          %p444 = pneg %p174
        $region66: #{tpu_custom_call.1} parent=47 // pred_check_branch
          %446 = sbr.rel (%p444) target = $region68
        $region67: #{tpu_custom_call.1} parent=47 // pred_region
          %448 = dma.done [#allocation13], 256
        $region68: #{tpu_custom_call.1} parent=47 // pred_fallthru
          _
        // Predicated region
        $region69: #{tpu_custom_call.1} parent=47 // pred_check
          %p449 = pneg %p195
        $region70: #{tpu_custom_call.1} parent=47 // pred_check_branch
          %451 = sbr.rel (%p449) target = $region72
        $region71: #{tpu_custom_call.1} parent=47 // pred_region
          %453 = dma.done [#allocation16], 256
        $region72: #{tpu_custom_call.1} parent=47 // pred_fallthru
          _
        // Predicated region
        $region73: #{tpu_custom_call.1} parent=47 // pred_check
          %p454 = pneg %p216
        $region74: #{tpu_custom_call.1} parent=47 // pred_check_branch
          %456 = sbr.rel (%p454) target = $region76
        $region75: #{tpu_custom_call.1} parent=47 // pred_region
          %458 = dma.done [#allocation16], 256
        $region76: #{tpu_custom_call.1} parent=47 // pred_fallthru
          _
        %s459 = sand.u32 %s60, 1
        %s460 = scalar_lea.sflag [#allocation7], %s459
        %s461 = sand.u32 %s60, 1
        %s462 = smul.addr %s461, 8
        %s463 = scalar_lea.vmem [#allocation6], %s462
        %p464 = pneg %p73
        %p465 = pneg %p70
        %s466 = sand.u32 %s31, 1
        %s467 = scalar_lea.sflag [#allocation10], %s466
        %s468 = sand.u32 %s86, 1
        %s469 = smul.addr %s468, 8
        %s470 = scalar_lea.vmem [#allocation9], %s469
        %p471 = pneg %p99
        %p472 = pneg %p96
        %s473 = sand.u32 %s31, 1
        %s474 = scalar_lea.sflag [#allocation10], %s473
        %s475 = sand.u32 %s114, 1
        %s476 = smul.addr %s475, 8
        %s477 = scalar_lea.vmem [#allocation11], %s476
        %p478 = pneg %p127
        %p479 = pneg %p124
        %s480 = sand.u32 %s31, 1
        %s481 = scalar_lea.sflag [#allocation13], %s480
        %s482 = sand.u32 %s140, 1
        %s483 = smul.addr %s482, 8
        %s484 = scalar_lea.vmem [#allocation12], %s483
        %p485 = pneg %p153
        %p486 = pneg %p150
        %p487 = pneg %p174
        %p488 = pneg %p171
        %p489 = pneg %p195
        %p490 = pneg %p192
        %p491 = pneg %p216
        %p492 = pneg %p213
        %p493 = pneg %p244
        %p494 = pneg %p241
        %s495 = sand.u32 %s231, 1
        %s496 = scalar_lea.sflag [#allocation8], %s495
        %s497 = sand.u32 %s231, 1
        %s498 = smul.addr %s497, 16
        %s499 = scalar_lea.vmem [#allocation18], %s498
        %s500 = smul.u32 2, %s37
        %s501 = smul.u32 2, %s37
        %s502 = smul.u32 2, %s38
        %s503 = smul.u32 2, %s38
        %s504 = smul.u32 2, %s37
        %s506 = smul.u32 %s37, 16
        %s507 = smul.u32 %s38, 16
        %p508 = scmp.eq.s32.totalorder %s38, 0
        // Predicated region
        $region77: #{tpu_custom_call.1} parent=47 // pred_check
          %p509 = pneg %p508
        $region78: #{tpu_custom_call.1} parent=47 // pred_check_branch
          %511 = sbr.rel (%p509) target = $region80
        $region79: #{tpu_custom_call.1} parent=47 // pred_region
          %v512 = vld [vmem:[%s408] sm:$0xf]
          %v513 = vld [vmem:[%s408 + $0x4] sm:$0xf]
          %v514 = vld [vmem:[%s418] sm:$0xf]
          %v515 = vld [vmem:[%s418 + $0x4] sm:$0xf]
          %v516 = vunpack.c.l.bf16 %v512
          %v517 = vunpack.c.l.bf16 %v513
          %v518 = vunpack.c.l.bf16 %v514
          %v519 = vunpack.c.l.bf16 %v515
          %v520 = vadd.f32 %v516, %v518
          %v521 = vadd.f32 %v517, %v519
          %v522 = vpack.c.bf16 %v521, %v520
          %v523 = vld [vmem:[#allocation14] sm:$0xf]
          %v524 = vld [vmem:[#allocation14 + $0x4] sm:$0xf]
          %v525 = vld [vmem:[#allocation14 + $0x8] sm:$0xf]
          %v526 = vld [vmem:[#allocation14 + $0xc] sm:$0xf]
          %v531 = vunpack.c.l.b16 %v523
          %v532 = vunpack.c.l.b16 %v524
          %v533 = vunpack.c.l.b16 %v525
          %v534 = vunpack.c.l.b16 %v526
          %v535 = vpack.c.b16 %v532, %v531
          %v536 = vpack.c.b16 %v534, %v533
          %vm539 = vcmask 261120
          %v541 = vsel %vm539, %v522, 0
          %543 = vmatpush.bf16.msra.mxu0 0
          %544 = vmatpush.bf16.msra.mxu0 0
          %545 = vmatpush.bf16.msra.mxu0 0
          %546 = vmatpush.bf16.msra.mxu0 0
          %547 = vmatpush.bf16.msra.mxu0 0
          %548 = vmatpush.bf16.msra.mxu0 0
          %549 = vmatpush.bf16.msra.mxu0 %v536
          %550 = vmatpush.bf16.msra.mxu0 %v535
          %551 = vmatmul.bf16.gmra.mxu0 %v541
          %v552 = vpop.f32.mrf.mxu0
          %v553 = vadd.f32 0.0, %v552
          %v554 = vpop.f32.mrf.mxu0
          %v555 = vadd.f32 0.0, %v554
          %556 = vdwg.mxu0
          %v557 = vpack.c.bf16 %v553, %v553
          %v558 = vpack.c.bf16 %v555, %v555
          %vm559 = vcmask 257024
          %560 = vst.msk [vmem:[#allocation2] sm:$0xf] %vm559, %v557
          %561 = vst.msk [vmem:[#allocation2 + $0x4] sm:$0xf] %vm559, %v558
          %vm562 = vcmask 7168
          %563 = vst.msk [vmem:[#allocation3] sm:$0xff] %vm562, -inf
          %564 = vst.msk [vmem:[#allocation3 + $0x8] sm:$0xff] %vm562, -inf
          %565 = vst.msk [vmem:[#allocation3 + $0x10] sm:$0xff] %vm562, -inf
          %566 = vst.msk [vmem:[#allocation3 + $0x18] sm:$0xff] %vm562, -inf
          %567 = vst.msk [vmem:[#allocation3 + $0x20] sm:$0xff] %vm562, -inf
          %568 = vst.msk [vmem:[#allocation3 + $0x28] sm:$0xff] %vm562, -inf
          %569 = vst.msk [vmem:[#allocation3 + $0x30] sm:$0xff] %vm562, -inf
          %570 = vst.msk [vmem:[#allocation3 + $0x38] sm:$0xff] %vm562, -inf
          %571 = vst.msk [vmem:[#allocation4] sm:$0xff] %vm562, 0.0
          %572 = vst.msk [vmem:[#allocation4 + $0x8] sm:$0xff] %vm562, 0.0
          %573 = vst.msk [vmem:[#allocation4 + $0x10] sm:$0xff] %vm562, 0.0
          %574 = vst.msk [vmem:[#allocation4 + $0x18] sm:$0xff] %vm562, 0.0
          %575 = vst.msk [vmem:[#allocation4 + $0x20] sm:$0xff] %vm562, 0.0
          %576 = vst.msk [vmem:[#allocation4 + $0x28] sm:$0xff] %vm562, 0.0
          %577 = vst.msk [vmem:[#allocation4 + $0x30] sm:$0xff] %vm562, 0.0
          %578 = vst.msk [vmem:[#allocation4 + $0x38] sm:$0xff] %vm562, 0.0
          %579 = vst.msk [vmem:[#allocation5] sm:$0xff] %vm539, 0.0
          %580 = vst.msk [vmem:[#allocation5 + $0x8] sm:$0xff] %vm539, 0.0
        $region80: #{tpu_custom_call.1} parent=47 // pred_fallthru
          _
        %s581 = sadd.s32 %s506, 16
        %p582 = scmp.lt.s32.totalorder %s507, %s581
        // Predicated region
        $region81: #{tpu_custom_call.1} parent=47 // pred_check
          %p583 = pneg %p582
        $region82: #{tpu_custom_call.1} parent=47 // pred_check_branch
          %585 = sbr.rel (%p583) target = $region84
        $region83: #{tpu_custom_call.1} parent=47 // pred_region
          %v586 = vld [vmem:[%s428] sm:$0xf]
          %v587 = vld [vmem:[%s428 + $0x4] sm:$0xf]
          %v588 = vld [vmem:[%s438] sm:$0xf]
          %v589 = vld [vmem:[%s438 + $0x4] sm:$0xf]
          %v590 = vunpack.c.l.bf16 %v586
          %v591 = vunpack.c.l.bf16 %v587
          %v592 = vunpack.c.l.bf16 %v588
          %v593 = vunpack.c.l.bf16 %v589
          %v594 = vadd.f32 %v590, %v592
          %v595 = vadd.f32 %v591, %v593
          %v596 = vpack.c.bf16 %v595, %v594
          %v597 = vld [vmem:[#allocation14] sm:$0xf]
          %v598 = vld [vmem:[#allocation14 + $0x4] sm:$0xf]
          %v599 = vld [vmem:[#allocation14 + $0x8] sm:$0xf]
          %v600 = vld [vmem:[#allocation14 + $0xc] sm:$0xf]
          %v605 = vunpack.c.l.b16 %v597
          %v606 = vunpack.c.l.b16 %v598
          %v607 = vunpack.c.l.b16 %v599
          %v608 = vunpack.c.l.b16 %v600
          %v609 = vpack.c.b16 %v606, %v605
          %v610 = vpack.c.b16 %v608, %v607
          %611 = vrot.lane.b32.xlu0 %v609, 96
          %v612 = vpop.permute.xlu0 %611
          %613 = vrot.lane.b32.xlu0 %v610, 96
          %v614 = vpop.permute.xlu0 %613
          %vm617 = vcmask 261120
          %v619 = vsel %vm617, %v596, 0
          %621 = vmatpush.bf16.msra.mxu0 0
          %622 = vmatpush.bf16.msra.mxu0 0
          %623 = vmatpush.bf16.msra.mxu0 0
          %624 = vmatpush.bf16.msra.mxu0 0
          %625 = vmatpush.bf16.msra.mxu0 0
          %626 = vmatpush.bf16.msra.mxu0 0
          %627 = vmatpush.bf16.msra.mxu0 %v614
          %628 = vmatpush.bf16.msra.mxu0 %v612
          %629 = vmatmul.bf16.gmra.mxu0 %v619
          %v630 = vpop.f32.mrf.mxu0
          %v631 = vadd.f32 0.0, %v630
          %v632 = vpop.f32.mrf.mxu0
          %v633 = vadd.f32 0.0, %v632
          %634 = vdwg.mxu0
          %v635 = vpack.c.bf16 %v631, %v631
          %v636 = vpack.c.bf16 %v633, %v633
          %v637 = vld [vmem:[#allocation15] sm:$0xf]
          %v638 = vld [vmem:[#allocation15 + $0x4] sm:$0xf]
          %v639 = vld [vmem:[#allocation15 + $0x8] sm:$0xf]
          %v640 = vld [vmem:[#allocation15 + $0xc] sm:$0xf]
          %v643 = vunpack.c.l.b16 %v586
          %v644 = vunpack.c.l.b16 %v587
          %v645 = vpack.c.b16 %v644, %v643
          %v650 = vunpack.c.l.b16 %v637
          %v651 = vunpack.c.l.b16 %v638
          %v652 = vunpack.c.l.b16 %v639
          %v653 = vunpack.c.l.b16 %v640
          %v654 = vpack.c.b16 %v651, %v650
          %v655 = vpack.c.b16 %v653, %v652
          %v659 = vsel %vm617, %v645, 0
          %661 = vmatpush.bf16.msra.mxu0 0
          %662 = vmatpush.bf16.msra.mxu0 0
          %663 = vmatpush.bf16.msra.mxu0 0
          %664 = vmatpush.bf16.msra.mxu0 0
          %665 = vmatpush.bf16.msra.mxu0 0
          %666 = vmatpush.bf16.msra.mxu0 0
          %667 = vmatpush.bf16.msra.mxu0 %v655
          %668 = vmatpush.bf16.msra.mxu0 %v654
          %669 = vmatmul.bf16.gmra.mxu0 %v659
          %v670 = vpop.f32.mrf.mxu0
          %v671 = vadd.f32 0.0, %v670
          %v672 = vpop.f32.mrf.mxu0
          %v673 = vadd.f32 0.0, %v672
          %674 = vdwg.mxu0
          %v675 = vpack.c.bf16 %v671, %v671
          %v676 = vpack.c.bf16 %v673, %v673
          %v677 = vlaneseq
          %v678 = vshrl.u32 %v677, 7
          %v679 = vadd.s32 %v678, 8
          %v680 = vstv %s506
          %v681 = vadd.s32 %v680, %v678
          %v682 = vadd.s32 %v680, %v679
          %v683 = vlaneseq
          %v684 = vand.u32 %v683, 127
          %v685 = vstv %s507
          %v686 = vadd.s32 %v685, %v684
          %vm687 = vcmp.lt.s32.totalorder %v681, %v686
          %vm688 = vcmp.lt.s32.totalorder %v682, %v686
          %v689 = vld [vmem:[#allocation2] sm:$0xf]
          %v690 = vld [vmem:[#allocation2 + $0x4] sm:$0xf]
          %v693 = vunpack.c.l.b16 %v689
          %v694 = vunpack.c.l.b16 %v690
          %v695 = vpack.c.b16 %v694, %v693
          %v698 = vunpack.c.l.b16 %v635
          %v699 = vunpack.c.l.b16 %v636
          %v700 = vpack.c.b16 %v699, %v698
          %vm701 = vcmask 64512
          %v703 = vsel %vm701, %v695, 0
          %v706 = vsel %vm701, %v700, 0
          %708 = vmatpush.bf16.xpose.msra.mxu0 0
          %709 = vmatpush.bf16.xpose.msra.mxu0 0
          %710 = vmatpush.bf16.xpose.msra.mxu0 0
          %711 = vmatpush.bf16.xpose.msra.mxu0 0
          %712 = vmatpush.bf16.xpose.msra.mxu0 0
          %713 = vmatpush.bf16.xpose.msra.mxu0 0
          %714 = vmatpush.bf16.xpose.msra.mxu0 0
          %715 = vmatpush.bf16.xpose.msra.mxu0 %v706
          %716 = vmatmul.bf16.gmra.mxu0 %v703
          %v717 = vpop.f32.mrf.mxu0
          %v718 = vadd.f32 0.0, %v717
          %v719 = vpop.f32.mrf.mxu0
          %v720 = vadd.f32 0.0, %v719
          %721 = vdwg.mxu0
          %v722 = vsel %vm687, -10000.0, %v718
          %v723 = vsel %vm688, -10000.0, %v720
          %v724 = vld [vmem:[#allocation3] sm:$0xff]
          %v725 = vld [vmem:[#allocation3 + $0x8] sm:$0xff]
          %vm726 = vcmask 130048
          %v727 = vsel %vm726, %v722, -inf
          %728 = vmax.xlane.f32.xlu0 %v727
          %v729 = vpop.xlane.xlu0 %728
          %v730 = vsel %vm726, %v723, -inf
          %731 = vmax.xlane.f32.xlu0 %v730
          %v732 = vpop.xlane.xlu0 %731
          %v733 = vmax.f32 %v724, %v729
          %v734 = vmax.f32 %v725, %v732
          %v735 = vsub.f32 %v724, %v733
          %v736 = vsub.f32 %v725, %v734
          %v737 = vmul.f32 %v735, 1.442695
          %v738 = vpow.pop %v737
          %v739 = vmul.f32 %v736, 1.442695
          %v740 = vpow.pop %v739
          %742 = vset.pattern.permute.xlu0 0
          %743 = vperm.xlu0 %742, %v733
          %v744 = vpop.permute.xlu0 %743
          %747 = vset.pattern.permute.xlu0 0
          %748 = vperm.xlu0 %747, %v734
          %v749 = vpop.permute.xlu0 %748
          %v751 = vsub.f32 %v722, %v744
          %v752 = vsub.f32 %v723, %v749
          %v753 = vmul.f32 %v751, 1.442695
          %v754 = vpow.pop %v753
          %v755 = vmul.f32 %v752, 1.442695
          %v756 = vpow.pop %v755
          %v757 = vld [vmem:[#allocation4] sm:$0xff]
          %v758 = vld [vmem:[#allocation4 + $0x8] sm:$0xff]
          %v759 = vmul.f32 %v738, %v757
          %v760 = vmul.f32 %v740, %v758
          %v761 = vsel %vm726, %v754, 0.0
          %762 = vadd.xlane.f32.xlu0 %v761
          %v763 = vpop.xlane.xlu0 %762
          %v764 = vsel %vm726, %v756, 0.0
          %765 = vadd.xlane.f32.xlu0 %v764
          %v766 = vpop.xlane.xlu0 %765
          %v767 = vadd.f32 %v759, %v763
          %v768 = vadd.f32 %v760, %v766
          %vm769 = vcmask 7168
          %770 = vst.msk [vmem:[#allocation4] sm:$0xff] %vm769, %v767
          %771 = vst.msk [vmem:[#allocation4 + $0x8] sm:$0xff] %vm769, %v768
          %v772 = vpack.c.bf16 %v756, %v754
          %v775 = vunpack.c.l.b16 %v675
          %v776 = vunpack.c.l.b16 %v676
          %v777 = vpack.c.b16 %v776, %v775
          %v780 = vsel %vm726, %v772, 0
          %782 = vmatpush.bf16.msra.mxu0 0
          %783 = vmatpush.bf16.msra.mxu0 0
          %784 = vmatpush.bf16.msra.mxu0 0
          %785 = vmatpush.bf16.msra.mxu0 0
          %786 = vmatpush.bf16.msra.mxu0 0
          %787 = vmatpush.bf16.msra.mxu0 0
          %788 = vmatpush.bf16.msra.mxu0 0
          %789 = vmatpush.bf16.msra.mxu0 %v777
          %790 = vmatmul.bf16.gmra.mxu0 %v780
          %v791 = vpop.f32.mrf.mxu0
          %v792 = vadd.f32 0.0, %v791
          %v793 = vpop.f32.mrf.mxu0
          %v794 = vadd.f32 0.0, %v793
          %795 = vdwg.mxu0
          %v796 = vld [vmem:[#allocation5] sm:$0xff]
          %v797 = vld [vmem:[#allocation5 + $0x8] sm:$0xff]
          %799 = vset.pattern.permute.xlu0 0
          %800 = vperm.xlu0 %799, %v738
          %v801 = vpop.permute.xlu0 %800
          %804 = vset.pattern.permute.xlu0 0
          %805 = vperm.xlu0 %804, %v740
          %v806 = vpop.permute.xlu0 %805
          %v808 = vmul.f32 %v801, %v796
          %v809 = vmul.f32 %v806, %v797
          %v810 = vadd.f32 %v808, %v792
          %v811 = vadd.f32 %v809, %v794
          %812 = vst.msk [vmem:[#allocation5] sm:$0xff] %vm701, %v810
          %813 = vst.msk [vmem:[#allocation5 + $0x8] sm:$0xff] %vm701, %v811
          %814 = vst.msk [vmem:[#allocation3] sm:$0xff] %vm769, %v733
          %815 = vst.msk [vmem:[#allocation3 + $0x8] sm:$0xff] %vm769, %v734
          %v816 = vld [vmem:[#allocation2] sm:$0xf]
          %v817 = vld [vmem:[#allocation2 + $0x4] sm:$0xf]
          %v820 = vunpack.c.l.b16 %v816
          %v821 = vunpack.c.l.b16 %v817
          %v822 = vpack.c.b16 %v821, %v820
          %823 = vrot.lane.b32.xlu0 %v822, 120
          %v824 = vpop.permute.xlu0 %823
          %825 = vrot.lane.b32.xlu0 %v700, 120
          %v826 = vpop.permute.xlu0 %825
          %v828 = vsel %vm701, %v824, 0
          %v831 = vsel %vm701, %v826, 0
          %833 = vmatpush.bf16.xpose.msra.mxu0 0
          %834 = vmatpush.bf16.xpose.msra.mxu0 0
          %835 = vmatpush.bf16.xpose.msra.mxu0 0
          %836 = vmatpush.bf16.xpose.msra.mxu0 0
          %837 = vmatpush.bf16.xpose.msra.mxu0 0
          %838 = vmatpush.bf16.xpose.msra.mxu0 0
          %839 = vmatpush.bf16.xpose.msra.mxu0 0
          %840 = vmatpush.bf16.xpose.msra.mxu0 %v831
          %841 = vmatmul.bf16.gmra.mxu0 %v828
          %v842 = vpop.f32.mrf.mxu0
          %v843 = vadd.f32 0.0, %v842
          %v844 = vpop.f32.mrf.mxu0
          %v845 = vadd.f32 0.0, %v844
          %846 = vdwg.mxu0
          %v847 = vsel %vm687, -10000.0, %v843
          %v848 = vsel %vm688, -10000.0, %v845
          %s849 = scalar_lea.vmem [#allocation3], 16
          %v850 = vld [vmem:[%s849] sm:$0xff]
          %v851 = vld [vmem:[%s849 + $0x8] sm:$0xff]
          %v852 = vsel %vm726, %v847, -inf
          %853 = vmax.xlane.f32.xlu0 %v852
          %v854 = vpop.xlane.xlu0 %853
          %v855 = vsel %vm726, %v848, -inf
          %856 = vmax.xlane.f32.xlu0 %v855
          %v857 = vpop.xlane.xlu0 %856
          %v858 = vmax.f32 %v850, %v854
          %v859 = vmax.f32 %v851, %v857
          %v860 = vsub.f32 %v850, %v858
          %v861 = vsub.f32 %v851, %v859
          %v862 = vmul.f32 %v860, 1.442695
          %v863 = vpow.pop %v862
          %v864 = vmul.f32 %v861, 1.442695
          %v865 = vpow.pop %v864
          %867 = vset.pattern.permute.xlu0 0
          %868 = vperm.xlu0 %867, %v858
          %v869 = vpop.permute.xlu0 %868
          %872 = vset.pattern.permute.xlu0 0
          %873 = vperm.xlu0 %872, %v859
          %v874 = vpop.permute.xlu0 %873
          %v876 = vsub.f32 %v847, %v869
          %v877 = vsub.f32 %v848, %v874
          %v878 = vmul.f32 %v876, 1.442695
          %v879 = vpow.pop %v878
          %v880 = vmul.f32 %v877, 1.442695
          %v881 = vpow.pop %v880
          %s882 = scalar_lea.vmem [#allocation4], 16
          %v883 = vld [vmem:[%s882] sm:$0xff]
          %v884 = vld [vmem:[%s882 + $0x8] sm:$0xff]
          %v885 = vmul.f32 %v863, %v883
          %v886 = vmul.f32 %v865, %v884
          %v887 = vsel %vm726, %v879, 0.0
          %888 = vadd.xlane.f32.xlu0 %v887
          %v889 = vpop.xlane.xlu0 %888
          %v890 = vsel %vm726, %v881, 0.0
          %891 = vadd.xlane.f32.xlu0 %v890
          %v892 = vpop.xlane.xlu0 %891
          %v893 = vadd.f32 %v885, %v889
          %v894 = vadd.f32 %v886, %v892
          %895 = vst.msk [vmem:[%s882] sm:$0xff] %vm769, %v893
          %896 = vst.msk [vmem:[%s882 + $0x8] sm:$0xff] %vm769, %v894
          %v897 = vpack.c.bf16 %v881, %v879
          %898 = vrot.lane.b32.xlu0 %v777, 120
          %v899 = vpop.permute.xlu0 %898
          %v902 = vsel %vm726, %v897, 0
          %904 = vmatpush.bf16.msra.mxu0 0
          %905 = vmatpush.bf16.msra.mxu0 0
          %906 = vmatpush.bf16.msra.mxu0 0
          %907 = vmatpush.bf16.msra.mxu0 0
          %908 = vmatpush.bf16.msra.mxu0 0
          %909 = vmatpush.bf16.msra.mxu0 0
          %910 = vmatpush.bf16.msra.mxu0 0
          %911 = vmatpush.bf16.msra.mxu0 %v899
          %912 = vmatmul.bf16.gmra.mxu0 %v902
          %v913 = vpop.f32.mrf.mxu0
          %v914 = vadd.f32 0.0, %v913
          %v915 = vpop.f32.mrf.mxu0
          %v916 = vadd.f32 0.0, %v915
          %917 = vdwg.mxu0
          %v918 = vld [vmem:[#allocation5] sm:$0xff]
          %v919 = vld [vmem:[#allocation5 + $0x8] sm:$0xff]
          %921 = vset.pattern.permute.xlu0 0
          %922 = vperm.xlu0 %921, %v863
          %v923 = vpop.permute.xlu0 %922
          %926 = vset.pattern.permute.xlu0 0
          %927 = vperm.xlu0 %926, %v865
          %v928 = vpop.permute.xlu0 %927
          %v930 = vmul.f32 %v923, %v918
          %v931 = vmul.f32 %v928, %v919
          %934 = vrot.lane.b32.xlu0 %v914, 8
          %v935 = vpop.permute.xlu0 %934
          %936 = vrot.lane.b32.xlu0 %v916, 8
          %v937 = vpop.permute.xlu0 %936
          %v940 = vadd.f32 %v930, %v935
          %v941 = vadd.f32 %v931, %v937
          %vm942 = vcmask 130112
          %943 = vst.msk [vmem:[#allocation5] sm:$0xff] %vm942, %v940
          %944 = vst.msk [vmem:[#allocation5 + $0x8] sm:$0xff] %vm942, %v941
          %945 = vst.msk [vmem:[%s849] sm:$0xff] %vm769, %v858
          %946 = vst.msk [vmem:[%s849 + $0x8] sm:$0xff] %vm769, %v859
          %v947 = vld [vmem:[#allocation2] sm:$0xf]
          %v948 = vld [vmem:[#allocation2 + $0x4] sm:$0xf]
          %v951 = vunpack.c.l.b16 %v947
          %v952 = vunpack.c.l.b16 %v948
          %v953 = vpack.c.b16 %v952, %v951
          %954 = vrot.lane.b32.xlu0 %v953, 112
          %v955 = vpop.permute.xlu0 %954
          %956 = vrot.lane.b32.xlu0 %v700, 112
          %v957 = vpop.permute.xlu0 %956
          %v959 = vsel %vm701, %v955, 0
          %v962 = vsel %vm701, %v957, 0
          %964 = vmatpush.bf16.xpose.msra.mxu0 0
          %965 = vmatpush.bf16.xpose.msra.mxu0 0
          %966 = vmatpush.bf16.xpose.msra.mxu0 0
          %967 = vmatpush.bf16.xpose.msra.mxu0 0
          %968 = vmatpush.bf16.xpose.msra.mxu0 0
          %969 = vmatpush.bf16.xpose.msra.mxu0 0
          %970 = vmatpush.bf16.xpose.msra.mxu0 0
          %971 = vmatpush.bf16.xpose.msra.mxu0 %v962
          %972 = vmatmul.bf16.gmra.mxu0 %v959
          %v973 = vpop.f32.mrf.mxu0
          %v974 = vadd.f32 0.0, %v973
          %v975 = vpop.f32.mrf.mxu0
          %v976 = vadd.f32 0.0, %v975
          %977 = vdwg.mxu0
          %v978 = vsel %vm687, -10000.0, %v974
          %v979 = vsel %vm688, -10000.0, %v976
          %s980 = scalar_lea.vmem [#allocation3], 32
          %v981 = vld [vmem:[%s980] sm:$0xff]
          %v982 = vld [vmem:[%s980 + $0x8] sm:$0xff]
          %v983 = vsel %vm726, %v978, -inf
          %984 = vmax.xlane.f32.xlu0 %v983
          %v985 = vpop.xlane.xlu0 %984
          %v986 = vsel %vm726, %v979, -inf
          %987 = vmax.xlane.f32.xlu0 %v986
          %v988 = vpop.xlane.xlu0 %987
          %v989 = vmax.f32 %v981, %v985
          %v990 = vmax.f32 %v982, %v988
          %v991 = vsub.f32 %v981, %v989
          %v992 = vsub.f32 %v982, %v990
          %v993 = vmul.f32 %v991, 1.442695
          %v994 = vpow.pop %v993
          %v995 = vmul.f32 %v992, 1.442695
          %v996 = vpow.pop %v995
          %998 = vset.pattern.permute.xlu0 0
          %999 = vperm.xlu0 %998, %v989
          %v1000 = vpop.permute.xlu0 %999
          %1003 = vset.pattern.permute.xlu0 0
          %1004 = vperm.xlu0 %1003, %v990
          %v1005 = vpop.permute.xlu0 %1004
          %v1007 = vsub.f32 %v978, %v1000
          %v1008 = vsub.f32 %v979, %v1005
          %v1009 = vmul.f32 %v1007, 1.442695
          %v1010 = vpow.pop %v1009
          %v1011 = vmul.f32 %v1008, 1.442695
          %v1012 = vpow.pop %v1011
          %s1013 = scalar_lea.vmem [#allocation4], 32
          %v1014 = vld [vmem:[%s1013] sm:$0xff]
          %v1015 = vld [vmem:[%s1013 + $0x8] sm:$0xff]
          %v1016 = vmul.f32 %v994, %v1014
          %v1017 = vmul.f32 %v996, %v1015
          %v1018 = vsel %vm726, %v1010, 0.0
          %1019 = vadd.xlane.f32.xlu0 %v1018
          %v1020 = vpop.xlane.xlu0 %1019
          %v1021 = vsel %vm726, %v1012, 0.0
          %1022 = vadd.xlane.f32.xlu0 %v1021
          %v1023 = vpop.xlane.xlu0 %1022
          %v1024 = vadd.f32 %v1016, %v1020
          %v1025 = vadd.f32 %v1017, %v1023
          %1026 = vst.msk [vmem:[%s1013] sm:$0xff] %vm769, %v1024
          %1027 = vst.msk [vmem:[%s1013 + $0x8] sm:$0xff] %vm769, %v1025
          %v1028 = vpack.c.bf16 %v1012, %v1010
          %1029 = vrot.lane.b32.xlu0 %v777, 112
          %v1030 = vpop.permute.xlu0 %1029
          %v1033 = vsel %vm726, %v1028, 0
          %1035 = vmatpush.bf16.msra.mxu0 0
          %1036 = vmatpush.bf16.msra.mxu0 0
          %1037 = vmatpush.bf16.msra.mxu0 0
          %1038 = vmatpush.bf16.msra.mxu0 0
          %1039 = vmatpush.bf16.msra.mxu0 0
          %1040 = vmatpush.bf16.msra.mxu0 0
          %1041 = vmatpush.bf16.msra.mxu0 0
          %1042 = vmatpush.bf16.msra.mxu0 %v1030
          %1043 = vmatmul.bf16.gmra.mxu0 %v1033
          %v1044 = vpop.f32.mrf.mxu0
          %v1045 = vadd.f32 0.0, %v1044
          %v1046 = vpop.f32.mrf.mxu0
          %v1047 = vadd.f32 0.0, %v1046
          %1048 = vdwg.mxu0
          %v1049 = vld [vmem:[#allocation5] sm:$0xff]
          %v1050 = vld [vmem:[#allocation5 + $0x8] sm:$0xff]
          %1052 = vset.pattern.permute.xlu0 0
          %1053 = vperm.xlu0 %1052, %v994
          %v1054 = vpop.permute.xlu0 %1053
          %1057 = vset.pattern.permute.xlu0 0
          %1058 = vperm.xlu0 %1057, %v996
          %v1059 = vpop.permute.xlu0 %1058
          %v1061 = vmul.f32 %v1054, %v1049
          %v1062 = vmul.f32 %v1059, %v1050
          %1065 = vrot.lane.b32.xlu0 %v1045, 16
          %v1066 = vpop.permute.xlu0 %1065
          %1067 = vrot.lane.b32.xlu0 %v1047, 16
          %v1068 = vpop.permute.xlu0 %1067
          %v1071 = vadd.f32 %v1061, %v1066
          %v1072 = vadd.f32 %v1062, %v1068
          %vm1073 = vcmask 195712
          %1074 = vst.msk [vmem:[#allocation5] sm:$0xff] %vm1073, %v1071
          %1075 = vst.msk [vmem:[#allocation5 + $0x8] sm:$0xff] %vm1073, %v1072
          %1076 = vst.msk [vmem:[%s980] sm:$0xff] %vm769, %v989
          %1077 = vst.msk [vmem:[%s980 + $0x8] sm:$0xff] %vm769, %v990
          %v1078 = vld [vmem:[#allocation2] sm:$0xf]
          %v1079 = vld [vmem:[#allocation2 + $0x4] sm:$0xf]
          %v1082 = vunpack.c.l.b16 %v1078
          %v1083 = vunpack.c.l.b16 %v1079
          %v1084 = vpack.c.b16 %v1083, %v1082
          %1085 = vrot.lane.b32.xlu0 %v1084, 104
          %v1086 = vpop.permute.xlu0 %1085
          %1087 = vrot.lane.b32.xlu0 %v700, 104
          %v1088 = vpop.permute.xlu0 %1087
          %v1090 = vsel %vm701, %v1086, 0
          %v1093 = vsel %vm701, %v1088, 0
          %1095 = vmatpush.bf16.xpose.msra.mxu0 0
          %1096 = vmatpush.bf16.xpose.msra.mxu0 0
          %1097 = vmatpush.bf16.xpose.msra.mxu0 0
          %1098 = vmatpush.bf16.xpose.msra.mxu0 0
          %1099 = vmatpush.bf16.xpose.msra.mxu0 0
          %1100 = vmatpush.bf16.xpose.msra.mxu0 0
          %1101 = vmatpush.bf16.xpose.msra.mxu0 0
          %1102 = vmatpush.bf16.xpose.msra.mxu0 %v1093
          %1103 = vmatmul.bf16.gmra.mxu0 %v1090
          %v1104 = vpop.f32.mrf.mxu0
          %v1105 = vadd.f32 0.0, %v1104
          %v1106 = vpop.f32.mrf.mxu0
          %v1107 = vadd.f32 0.0, %v1106
          %1108 = vdwg.mxu0
          %v1109 = vsel %vm687, -10000.0, %v1105
          %v1110 = vsel %vm688, -10000.0, %v1107
          %s1111 = scalar_lea.vmem [#allocation3], 48
          %v1112 = vld [vmem:[%s1111] sm:$0xff]
          %v1113 = vld [vmem:[%s1111 + $0x8] sm:$0xff]
          %v1114 = vsel %vm726, %v1109, -inf
          %1115 = vmax.xlane.f32.xlu0 %v1114
          %v1116 = vpop.xlane.xlu0 %1115
          %v1117 = vsel %vm726, %v1110, -inf
          %1118 = vmax.xlane.f32.xlu0 %v1117
          %v1119 = vpop.xlane.xlu0 %1118
          %v1120 = vmax.f32 %v1112, %v1116
          %v1121 = vmax.f32 %v1113, %v1119
          %v1122 = vsub.f32 %v1112, %v1120
          %v1123 = vsub.f32 %v1113, %v1121
          %v1124 = vmul.f32 %v1122, 1.442695
          %v1125 = vpow.pop %v1124
          %v1126 = vmul.f32 %v1123, 1.442695
          %v1127 = vpow.pop %v1126
          %1129 = vset.pattern.permute.xlu0 0
          %1130 = vperm.xlu0 %1129, %v1120
          %v1131 = vpop.permute.xlu0 %1130
          %1134 = vset.pattern.permute.xlu0 0
          %1135 = vperm.xlu0 %1134, %v1121
          %v1136 = vpop.permute.xlu0 %1135
          %v1138 = vsub.f32 %v1109, %v1131
          %v1139 = vsub.f32 %v1110, %v1136
          %v1140 = vmul.f32 %v1138, 1.442695
          %v1141 = vpow.pop %v1140
          %v1142 = vmul.f32 %v1139, 1.442695
          %v1143 = vpow.pop %v1142
          %s1144 = scalar_lea.vmem [#allocation4], 48
          %v1145 = vld [vmem:[%s1144] sm:$0xff]
          %v1146 = vld [vmem:[%s1144 + $0x8] sm:$0xff]
          %v1147 = vmul.f32 %v1125, %v1145
          %v1148 = vmul.f32 %v1127, %v1146
          %v1149 = vsel %vm726, %v1141, 0.0
          %1150 = vadd.xlane.f32.xlu0 %v1149
          %v1151 = vpop.xlane.xlu0 %1150
          %v1152 = vsel %vm726, %v1143, 0.0
          %1153 = vadd.xlane.f32.xlu0 %v1152
          %v1154 = vpop.xlane.xlu0 %1153
          %v1155 = vadd.f32 %v1147, %v1151
          %v1156 = vadd.f32 %v1148, %v1154
          %1157 = vst.msk [vmem:[%s1144] sm:$0xff] %vm769, %v1155
          %1158 = vst.msk [vmem:[%s1144 + $0x8] sm:$0xff] %vm769, %v1156
          %v1159 = vpack.c.bf16 %v1143, %v1141
          %1160 = vrot.lane.b32.xlu0 %v777, 104
          %v1161 = vpop.permute.xlu0 %1160
          %v1164 = vsel %vm726, %v1159, 0
          %1166 = vmatpush.bf16.msra.mxu0 0
          %1167 = vmatpush.bf16.msra.mxu0 0
          %1168 = vmatpush.bf16.msra.mxu0 0
          %1169 = vmatpush.bf16.msra.mxu0 0
          %1170 = vmatpush.bf16.msra.mxu0 0
          %1171 = vmatpush.bf16.msra.mxu0 0
          %1172 = vmatpush.bf16.msra.mxu0 0
          %1173 = vmatpush.bf16.msra.mxu0 %v1161
          %1174 = vmatmul.bf16.gmra.mxu0 %v1164
          %v1175 = vpop.f32.mrf.mxu0
          %v1176 = vadd.f32 0.0, %v1175
          %v1177 = vpop.f32.mrf.mxu0
          %v1178 = vadd.f32 0.0, %v1177
          %1179 = vdwg.mxu0
          %v1180 = vld [vmem:[#allocation5] sm:$0xff]
          %v1181 = vld [vmem:[#allocation5 + $0x8] sm:$0xff]
          %1183 = vset.pattern.permute.xlu0 0
          %1184 = vperm.xlu0 %1183, %v1125
          %v1185 = vpop.permute.xlu0 %1184
          %1188 = vset.pattern.permute.xlu0 0
          %1189 = vperm.xlu0 %1188, %v1127
          %v1190 = vpop.permute.xlu0 %1189
          %v1192 = vmul.f32 %v1185, %v1180
          %v1193 = vmul.f32 %v1190, %v1181
          %1196 = vrot.lane.b32.xlu0 %v1176, 24
          %v1197 = vpop.permute.xlu0 %1196
          %1198 = vrot.lane.b32.xlu0 %v1178, 24
          %v1199 = vpop.permute.xlu0 %1198
          %v1202 = vadd.f32 %v1192, %v1197
          %v1203 = vadd.f32 %v1193, %v1199
          %vm1204 = vcmask 261312
          %1205 = vst.msk [vmem:[#allocation5] sm:$0xff] %vm1204, %v1202
          %1206 = vst.msk [vmem:[#allocation5 + $0x8] sm:$0xff] %vm1204, %v1203
          %1207 = vst.msk [vmem:[%s1111] sm:$0xff] %vm769, %v1120
          %1208 = vst.msk [vmem:[%s1111 + $0x8] sm:$0xff] %vm769, %v1121
        $region84: #{tpu_custom_call.1} parent=47 // pred_fallthru
          _
        %p1209 = scmp.eq.s32.totalorder %s38, 1
        // Predicated region
        $region85: #{tpu_custom_call.1} parent=47 // pred_check
          %p1210 = pneg %p1209
        $region86: #{tpu_custom_call.1} parent=47 // pred_check_branch
          %1212 = sbr.rel (%p1210) target = $region88
        $region87: #{tpu_custom_call.1} parent=47 // pred_region
          %v1213 = vld [vmem:[#allocation5] sm:$0xff]
          %v1214 = vld [vmem:[#allocation5 + $0x8] sm:$0xff]
          %v1215 = vld [vmem:[#allocation4] sm:$0xff]
          %v1216 = vld [vmem:[#allocation4 + $0x8] sm:$0xff]
          %v1217 = vrcp.pop %v1215
          %v1218 = vrcp.pop %v1216
          %1220 = vset.pattern.permute.xlu0 0
          %1221 = vperm.xlu0 %1220, %v1217
          %v1222 = vpop.permute.xlu0 %1221
          %1225 = vset.pattern.permute.xlu0 0
          %1226 = vperm.xlu0 %1225, %v1218
          %v1227 = vpop.permute.xlu0 %1226
          %v1229 = vmul.f32 %v1213, %v1222
          %v1230 = vmul.f32 %v1214, %v1227
          %vm1231 = vcmask 64512
          %1232 = vst.msk [vmem:[#allocation5] sm:$0xff] %vm1231, %v1229
          %1233 = vst.msk [vmem:[#allocation5 + $0x8] sm:$0xff] %vm1231, %v1230
          %v1234 = vld [vmem:[#allocation5] sm:$0xff]
          %v1235 = vld [vmem:[#allocation5 + $0x8] sm:$0xff]
          %s1236 = scalar_lea.vmem [#allocation4], 16
          %v1237 = vld [vmem:[%s1236] sm:$0xff]
          %v1238 = vld [vmem:[%s1236 + $0x8] sm:$0xff]
          %v1239 = vrcp.pop %v1237
          %v1240 = vrcp.pop %v1238
          %1242 = vset.pattern.permute.xlu0 0
          %1243 = vperm.xlu0 %1242, %v1239
          %v1244 = vpop.permute.xlu0 %1243
          %1247 = vset.pattern.permute.xlu0 0
          %1248 = vperm.xlu0 %1247, %v1240
          %v1249 = vpop.permute.xlu0 %1248
          %v1251 = vmul.f32 %v1234, %v1244
          %v1252 = vmul.f32 %v1235, %v1249
          %vm1253 = vcmask 130112
          %1254 = vst.msk [vmem:[#allocation5] sm:$0xff] %vm1253, %v1251
          %1255 = vst.msk [vmem:[#allocation5 + $0x8] sm:$0xff] %vm1253, %v1252
          %v1256 = vld [vmem:[#allocation5] sm:$0xff]
          %v1257 = vld [vmem:[#allocation5 + $0x8] sm:$0xff]
          %s1258 = scalar_lea.vmem [#allocation4], 32
          %v1259 = vld [vmem:[%s1258] sm:$0xff]
          %v1260 = vld [vmem:[%s1258 + $0x8] sm:$0xff]
          %v1261 = vrcp.pop %v1259
          %v1262 = vrcp.pop %v1260
          %1264 = vset.pattern.permute.xlu0 0
          %1265 = vperm.xlu0 %1264, %v1261
          %v1266 = vpop.permute.xlu0 %1265
          %1269 = vset.pattern.permute.xlu0 0
          %1270 = vperm.xlu0 %1269, %v1262
          %v1271 = vpop.permute.xlu0 %1270
          %v1273 = vmul.f32 %v1256, %v1266
          %v1274 = vmul.f32 %v1257, %v1271
          %vm1275 = vcmask 195712
          %1276 = vst.msk [vmem:[#allocation5] sm:$0xff] %vm1275, %v1273
          %1277 = vst.msk [vmem:[#allocation5 + $0x8] sm:$0xff] %vm1275, %v1274
          %v1278 = vld [vmem:[#allocation5] sm:$0xff]
          %v1279 = vld [vmem:[#allocation5 + $0x8] sm:$0xff]
          %s1280 = scalar_lea.vmem [#allocation4], 48
          %v1281 = vld [vmem:[%s1280] sm:$0xff]
          %v1282 = vld [vmem:[%s1280 + $0x8] sm:$0xff]
          %v1283 = vrcp.pop %v1281
          %v1284 = vrcp.pop %v1282
          %1286 = vset.pattern.permute.xlu0 0
          %1287 = vperm.xlu0 %1286, %v1283
          %v1288 = vpop.permute.xlu0 %1287
          %1291 = vset.pattern.permute.xlu0 0
          %1292 = vperm.xlu0 %1291, %v1284
          %v1293 = vpop.permute.xlu0 %1292
          %v1295 = vmul.f32 %v1278, %v1288
          %v1296 = vmul.f32 %v1279, %v1293
          %vm1297 = vcmask 261312
          %1298 = vst.msk [vmem:[#allocation5] sm:$0xff] %vm1297, %v1295
          %1299 = vst.msk [vmem:[#allocation5 + $0x8] sm:$0xff] %vm1297, %v1296
          %v1300 = vld [vmem:[#allocation5] sm:$0xff]
          %v1301 = vld [vmem:[#allocation5 + $0x8] sm:$0xff]
          %v1302 = vpack.c.bf16 %v1301, %v1300
          %v1303 = vld [vmem:[#allocation17] sm:$0xf]
          %v1304 = vld [vmem:[#allocation17 + $0x4] sm:$0xf]
          %v1305 = vld [vmem:[#allocation17 + $0x8] sm:$0xf]
          %v1306 = vld [vmem:[#allocation17 + $0xc] sm:$0xf]
          %v1311 = vunpack.c.l.b16 %v1303
          %v1312 = vunpack.c.l.b16 %v1304
          %v1313 = vunpack.c.l.b16 %v1305
          %v1314 = vunpack.c.l.b16 %v1306
          %v1315 = vpack.c.b16 %v1312, %v1311
          %v1316 = vpack.c.b16 %v1314, %v1313
          %vm1319 = vcmask 261120
          %v1321 = vsel %vm1319, %v1302, 0
          %1323 = vmatpush.bf16.msra.mxu0 0
          %1324 = vmatpush.bf16.msra.mxu0 0
          %1325 = vmatpush.bf16.msra.mxu0 0
          %1326 = vmatpush.bf16.msra.mxu0 0
          %1327 = vmatpush.bf16.msra.mxu0 0
          %1328 = vmatpush.bf16.msra.mxu0 0
          %1329 = vmatpush.bf16.msra.mxu0 %v1316
          %1330 = vmatpush.bf16.msra.mxu0 %v1315
          %1331 = vmatmul.bf16.gmra.mxu0 %v1321
          %v1332 = vpop.f32.mrf.mxu0
          %v1333 = vadd.f32 0.0, %v1332
          %v1334 = vpop.f32.mrf.mxu0
          %v1335 = vadd.f32 0.0, %v1334
          %1336 = vdwg.mxu0
          %1337 = vst.msk [vmem:[%s499] sm:$0xff] %vm1319, %v1333
          %1338 = vst.msk [vmem:[%s499 + $0x8] sm:$0xff] %vm1319, %v1335
        $region88: #{tpu_custom_call.1} parent=47 // pred_fallthru
          _
        %s1339 = sand.u32 %s231, 1
        %s1340 = scalar_lea.sflag [#allocation8], %s1339
        %s1341 = sand.u32 %s231, 1
        %s1342 = smul.addr %s1341, 16
        %s1343 = scalar_lea.vmem [#allocation18], %s1342
        // Predicated region
        $region89: #{tpu_custom_call.1} parent=47 // pred_check
          %p1344 = pneg %p241
        $region90: #{tpu_custom_call.1} parent=47 // pred_check_branch
          %1346 = sbr.rel (%p1344) target = $region92
        $region91: #{tpu_custom_call.1} parent=47 // pred_region
          %s1347 = smul.u32 2, %s37
          %1349 = vsyncadd %s1340, 0
          %s1350 = smul.addr %s36, 4
          %s1351 = sadd.s32 %s1347, %s1350
          %s1352 = smul.addr %s1351, 8
          %s1353 = scalar_lea.hbm %s7, %s1352
          %s1354 = sshll.u32 %s1343, 4
          %s1355 = int_to_ptr.vmem [resolvable:$true] %s1354
          %s1356 = sshll.u32 %s1353, 4
          %s1357 = int_to_ptr.hbm [resolvable:$true] %s1356
          %1362 = dma.vmem_to_hbm [thread:$0]  %s1355, 256, %s1357, %s1340, 128, 128, 8
        $region92: #{tpu_custom_call.1} parent=47 // pred_fallthru
          _
      $region48: #{tpu_custom_call.1} parent=5 // pred_fallthru
        _
      %p1363 = scmp.le.s32.totalorder 2, %s26
      // Predicated region
      $region93: #{tpu_custom_call.1} parent=5 // pred_check
        %p1364 = pneg %p1363
      $region94: #{tpu_custom_call.1} parent=5 // pred_check_branch
        %1366 = sbr.rel (%p1364) target = $region96
      $region95: #{tpu_custom_call.1} parent=5 // pred_region
        %s1367 = ssub.s32 %s26, 2
        // Predicated region
        $region97: #{tpu_custom_call.1} parent=95 // pred_check
          %p1368 = pneg %p247
        $region98: #{tpu_custom_call.1} parent=95 // pred_check_branch
          %1370 = sbr.rel (%p1368) target = $region100
        $region99: #{tpu_custom_call.1} parent=95 // pred_region
          %s1371 = sand.u32 %s232, 1
          %s1372 = scalar_lea.sflag [#allocation8], %s1371
          %s1373 = sand.u32 %s232, 1
          %s1374 = smul.addr %s1373, 16
          %s1375 = scalar_lea.vmem [#allocation18], %s1374
          %1377 = dma.done %s1372, 256
        $region100: #{tpu_custom_call.1} parent=95 // pred_fallthru
          _
      $region96: #{tpu_custom_call.1} parent=5 // pred_fallthru
        _
    $region6: #{tpu_custom_call.1} parent=1 // loop_footer
      %s30 = sadd.s32 1, %s26
    $region7: #{tpu_custom_call.1} parent=1 // loop_footer_branch
      %25 = sbr.rel target = $region3
    $region8: #{tpu_custom_call.1} parent=1 // loop_exit
      _
    %1378 = vsyncpa [#allocation7], 1
    %s1379 = scalar_lea.sflag [#allocation7], 1
    %1380 = vsyncpa %s1379, 1
    %1381 = vsyncpa [#allocation10], 1
    %s1382 = scalar_lea.sflag [#allocation10], 1
    %1383 = vsyncpa %s1382, 1
    %1384 = vsyncpa [#allocation13], 1
    %s1385 = scalar_lea.sflag [#allocation13], 1
    %1386 = vsyncpa %s1385, 1
    %1387 = vsyncpa [#allocation16], 1
    %1388 = vsyncpa [#allocation8], 1
    %s1389 = scalar_lea.sflag [#allocation8], 1
    %1390 = vsyncpa %s1389, 1

</llo_original>
